<compile_context>
chip_gen: v7x
topology: tpu7x:2x2x1
jax: 0.10.0
libtpu: 0.0.40
codegen_flags: <defaults>
</compile_context>

<pallas_src>
import jax
import jax.numpy as jnp
from jax.experimental import pallas as pl
from jax.experimental.pallas import tpu as pltpu


def encdec_kernel(x_ref, w1_ref, b1_ref, w2_ref, b2_ref, o_ref):
    # encoder: h = relu(x @ W1 + b1)   (bf16 MXU inputs, f32 accumulate)
    x_bf16 = x_ref[...].astype(jnp.bfloat16)
    h = jnp.dot(x_bf16, w1_ref[...], preferred_element_type=jnp.float32)
    h = jnp.maximum(h + b1_ref[...], 0.0)          # f32 VPU math (v5e-safe)
    # decoder: y = h @ W2 + b2
    y = jnp.dot(h.astype(jnp.bfloat16), w2_ref[...],
                preferred_element_type=jnp.float32)
    o_ref[...] = (y + b2_ref[...]).astype(o_ref.dtype)


def encdec_forward(x, w1, b1, w2, b2, *, tb=128):
    B, D_in = x.shape
    H = w1.shape[1]
    assert w1.shape == (D_in, H)
    assert w2.shape == (H, D_in)
    assert b1.shape == (1, H)
    assert b2.shape == (1, D_in)
    # Keep the demo simple: batch tiles must divide B evenly.
    tb = min(tb, B)
    assert B % tb == 0, "batch must be a multiple of the batch tile"

    flops = 2 * B * (D_in * H + H * D_in)
    bytes_accessed = (
        x.size * x.dtype.itemsize
        + w1.size * w1.dtype.itemsize
        + b1.size * b1.dtype.itemsize
        + w2.size * w2.dtype.itemsize
        + b2.size * b2.dtype.itemsize
        + B * D_in * x.dtype.itemsize
    )

    return pl.pallas_call(
        encdec_kernel,
        out_shape=jax.ShapeDtypeStruct((B, D_in), x.dtype),
        grid_spec=pl.GridSpec(
            grid=(B // tb,),
            in_specs=[
                pl.BlockSpec((tb, D_in), lambda i: (i, 0)),   # x: batch-tiled
                pl.BlockSpec((D_in, H), lambda i: (0, 0)),    # W1: resident
                pl.BlockSpec((1, H), lambda i: (0, 0)),       # b1: resident
                pl.BlockSpec((H, D_in), lambda i: (0, 0)),    # W2: resident
                pl.BlockSpec((1, D_in), lambda i: (0, 0)),    # b2: resident
            ],
            out_specs=pl.BlockSpec((tb, D_in), lambda i: (i, 0)),
        ),
        compiler_params=pltpu.CompilerParams(
            # Batch tiles are independent -> let megacore (v7x) split them.
            dimension_semantics=("parallel",),
        ),
        cost_estimate=pl.CostEstimate(
            flops=flops, transcendentals=0, bytes_accessed=bytes_accessed
        ),
    )(x, w1, b1, w2, b2)


def reference_forward(x, w1, b1, w2, b2):
    # f32 reference (weights upcast); kernel uses bf16 MXU operands with f32
    # accumulation, so comparison tolerance is relaxed accordingly.
    h = jnp.maximum(x @ w1.astype(jnp.float32) + b1, 0.0)
    return h @ w2.astype(jnp.float32) + b2


if __name__ == "__main__":
    # Lane-dense, 128-aligned shapes (still small enough to run instantly).
    B, D_in, H = 256, 256, 512
    TB = 128

    key = jax.random.PRNGKey(0)
    kx, kw1, kb1, kw2, kb2 = jax.random.split(key, 5)

    # Deterministic synthetic parameters (no checkpoint load).
    x = jax.random.normal(kx, (B, D_in), dtype=jnp.float32)
    w1 = (jax.random.normal(kw1, (D_in, H), dtype=jnp.float32)
          * (1.0 / jnp.sqrt(D_in))).astype(jnp.bfloat16)
    b1 = jax.random.normal(kb1, (1, H), dtype=jnp.float32) * 0.01
    w2 = (jax.random.normal(kw2, (H, D_in), dtype=jnp.float32)
          * (1.0 / jnp.sqrt(H))).astype(jnp.bfloat16)
    b2 = jax.random.normal(kb2, (1, D_in), dtype=jnp.float32) * 0.01

    out = encdec_forward(x, w1, b1, w2, b2, tb=TB)
    out = jax.block_until_ready(out)

    ref = reference_forward(x, w1, b1, w2, b2)
    assert out.shape == (B, D_in)
    # bf16 MXU inputs with f32 accumulation -> relaxed tolerance vs f32 ref.
    assert jnp.allclose(out, ref, atol=5e-2, rtol=5e-2)

    print("KERNEL_OK")
</pallas_src>

<mosaic_0001>
module attributes {stable_mosaic.version = 11 : i64} {
  func.func @encdec_kernel(%arg0: i32, %arg1: memref<128x256xf32, #tpu.memory_space<vmem>>, %arg2: memref<256x512xbf16, #tpu.memory_space<vmem>>, %arg3: memref<1x512xf32, #tpu.memory_space<vmem>>, %arg4: memref<512x256xbf16, #tpu.memory_space<vmem>>, %arg5: memref<1x256xf32, #tpu.memory_space<vmem>>, %arg6: memref<128x256xf32, #tpu.memory_space<vmem>>) attributes {dimension_semantics = [#tpu.dimension_semantics<parallel>], iteration_bounds = array<i64: 2>, scalar_prefetch = 0 : i64, scratch_operands = 0 : i64, tpu.core_type = #tpu.core_type<tc>, window_params = [{transform_indices = @transform_0, window_bounds = array<i64: 128, 256>}, {pipeline_mode = #tpu.pipeline_mode<synchronous>, transform_indices = @transform_1, window_bounds = array<i64: 256, 512>}, {pipeline_mode = #tpu.pipeline_mode<synchronous>, transform_indices = @transform_2, window_bounds = array<i64: 1, 512>}, {pipeline_mode = #tpu.pipeline_mode<synchronous>, transform_indices = @transform_3, window_bounds = array<i64: 512, 256>}, {pipeline_mode = #tpu.pipeline_mode<synchronous>, transform_indices = @transform_4, window_bounds = array<i64: 1, 256>}, {transform_indices = @transform_5, window_bounds = array<i64: 128, 256>}]} {
    %c0 = arith.constant 0 : index
    %c0_0 = arith.constant 0 : index
    %0 = vector.load %arg1[%c0, %c0_0] : memref<128x256xf32, #tpu.memory_space<vmem>>, vector<128x256xf32>
    %1 = arith.truncf %0 : vector<128x256xf32> to vector<128x256xbf16>
    %c0_1 = arith.constant 0 : index
    %c0_2 = arith.constant 0 : index
    %2 = vector.load %arg2[%c0_1, %c0_2] : memref<256x512xbf16, #tpu.memory_space<vmem>>, vector<256x512xbf16>
    %cst = arith.constant dense<0.000000e+00> : vector<128x512xf32>
    %3 = tpu.matmul %1, %2, %cst {dimension_numbers = #tpu.dot_dimension_numbers<[1], [0], [0], [1], [0, 0, 1, 1], [], []>} : vector<128x256xbf16>, vector<256x512xbf16>, vector<128x512xf32> -> vector<128x512xf32>
    %c0_3 = arith.constant 0 : index
    %c0_4 = arith.constant 0 : index
    %4 = vector.load %arg3[%c0_3, %c0_4] : memref<1x512xf32, #tpu.memory_space<vmem>>, vector<1x512xf32>
    %5 = vector.broadcast %4 : vector<1x512xf32> to vector<128x512xf32>
    %6 = arith.addf %3, %5 : vector<128x512xf32>
    %cst_5 = arith.constant 0.000000e+00 : f32
    %7 = vector.broadcast %cst_5 : f32 to vector<128x512xf32>
    %8 = arith.maximumf %6, %7 : vector<128x512xf32>
    %9 = arith.truncf %8 : vector<128x512xf32> to vector<128x512xbf16>
    %c0_6 = arith.constant 0 : index
    %c0_7 = arith.constant 0 : index
    %10 = vector.load %arg4[%c0_6, %c0_7] : memref<512x256xbf16, #tpu.memory_space<vmem>>, vector<512x256xbf16>
    %cst_8 = arith.constant dense<0.000000e+00> : vector<128x256xf32>
    %11 = tpu.matmul %9, %10, %cst_8 {dimension_numbers = #tpu.dot_dimension_numbers<[1], [0], [0], [1], [0, 0, 1, 1], [], []>} : vector<128x512xbf16>, vector<512x256xbf16>, vector<128x256xf32> -> vector<128x256xf32>
    %c0_9 = arith.constant 0 : index
    %c0_10 = arith.constant 0 : index
    %12 = vector.load %arg5[%c0_9, %c0_10] : memref<1x256xf32, #tpu.memory_space<vmem>>, vector<1x256xf32>
    %13 = vector.broadcast %12 : vector<1x256xf32> to vector<128x256xf32>
    %14 = arith.addf %11, %13 : vector<128x256xf32>
    %c0_11 = arith.constant 0 : index
    %c0_12 = arith.constant 0 : index
    %15 = vector.load %arg6[%c0_11, %c0_12] : memref<128x256xf32, #tpu.memory_space<vmem>>, vector<128x256xf32>
    tpu.vector_store %arg6[%c0_11, %c0_12], %14 {strides = array<i32>} : memref<128x256xf32, #tpu.memory_space<vmem>>, vector<128x256xf32>,
    return
  }
  func.func @transform_0(%arg0: i32) -> (i32, i32) {
    %c0_i32 = arith.constant 0 : i32
    %c0_i32_0 = arith.constant 0 : i32
    return %arg0, %c0_i32 : i32, i32
  }
  func.func @transform_1(%arg0: i32) -> (i32, i32) {
    %c0_i32 = arith.constant 0 : i32
    %c0_i32_0 = arith.constant 0 : i32
    %c0_i32_1 = arith.constant 0 : i32
    return %c0_i32, %c0_i32_0 : i32, i32
  }
  func.func @transform_2(%arg0: i32) -> (i32, i32) {
    %c0_i32 = arith.constant 0 : i32
    %c0_i32_0 = arith.constant 0 : i32
    %c0_i32_1 = arith.constant 0 : i32
    return %c0_i32, %c0_i32_0 : i32, i32
  }
  func.func @transform_3(%arg0: i32) -> (i32, i32) {
    %c0_i32 = arith.constant 0 : i32
    %c0_i32_0 = arith.constant 0 : i32
    %c0_i32_1 = arith.constant 0 : i32
    return %c0_i32, %c0_i32_0 : i32, i32
  }
  func.func @transform_4(%arg0: i32) -> (i32, i32) {
    %c0_i32 = arith.constant 0 : i32
    %c0_i32_0 = arith.constant 0 : i32
    %c0_i32_1 = arith.constant 0 : i32
    return %c0_i32, %c0_i32_0 : i32, i32
  }
  func.func @transform_5(%arg0: i32) -> (i32, i32) {
    %c0_i32 = arith.constant 0 : i32
    %c0_i32_0 = arith.constant 0 : i32
    return %arg0, %c0_i32 : i32, i32
  }
}

</mosaic_0001>

<llo_original>
// kernel: tpu_custom_call.1
$region0: #{tpu_custom_call.1}
  #allocation0 [shape = 'u32[]', space=smem, size = 0x4, offset = 0x4, fixed_abs, tag = 'smem constant byte address 0x4 - core index']
  #allocation1 [shape = 'u32[144,128]{1,0:T(1,128)}', space=vmem, size = 0x12000, scoped, tag = 'internal scratch']
  %s0 = inlined_call_operand.hbm [shape: f32[256,256], index: 0, kind: input, shape index: {}]
  %s1 = inlined_call_operand.hbm [shape: bf16[256,512], index: 1, kind: input, shape index: {}]
  %s2 = inlined_call_operand.vmem [shape: f32[1,512], index: 2, kind: input, shape index: {}]
  %s3 = inlined_call_operand.hbm [shape: bf16[512,256], index: 3, kind: input, shape index: {}]
  %s4 = inlined_call_operand.vmem [shape: f32[1,256], index: 4, kind: input, shape index: {}]
  %s5 = inlined_call_operand.hbm [shape: f32[256,256], index: 5, kind: output, shape index: {}]
  %s6 = sld [smem:[#allocation0]]
  $region65: #{tpu_custom_call.1} parent=0
    _
  %s8 = ssub.s32 1, %s6
  %s9 = scalar_select 0, %s8, %s6
  $region1: #{tpu_custom_call.1} parent=0
    #allocation2 [shape = 'u8[262144]{0}', space=vmem, size = 0x40000, scoped, tag = 'input window, operand 0']
    #allocation3 [shape = 's32[2]{0}', space=sflag, size = 0x8, scoped, tag = 'scoped memory for tpu_custom_call.1']
    #allocation4 [shape = 's32[2]{0}', space=sflag, size = 0x8, scoped, tag = 'scoped memory for tpu_custom_call.1']
    #allocation5 [shape = 'u8[262144]{0}', space=vmem, size = 0x40000, scoped, tag = 'input window, operand 1, single buffered']
    #allocation6 [shape = 's32[1]{0}', space=sflag, size = 0x4, scoped, tag = 'scoped memory for tpu_custom_call.1']
    #allocation7 [shape = 'u8[262144]{0}', space=vmem, size = 0x40000, scoped, tag = 'input window, operand 3, single buffered']
    #allocation8 [shape = 'u8[262144]{0}', space=vmem, size = 0x40000, scoped, tag = 'output window, operand 0']
    %10 = vsyncpa [#allocation3], 0
    %s11 = scalar_lea.sflag [#allocation3], 1
    %12 = vsyncpa %s11, 0
    %13 = vsyncpa [#allocation6], 0
    %14 = vsyncpa [#allocation4], 0
    %s15 = scalar_lea.sflag [#allocation4], 1
    %16 = vsyncpa %s15, 0
    loop: start=0, step=1, limit=4
    $region2: #{tpu_custom_call.1} parent=1 // loop_pre_header
      _
    $region3: #{tpu_custom_call.1} parent=1 // loop_header
      %s18 = sphi 0, %s22
      %p19 = scmp.ge.s32.totalorder %s18, 4
      %s28 = sphi 0, %s30
      %s31 = sphi 0, %s28
      %s32 = sphi 0, %s31
      %s48 = sphi 0, %s32
      %s52 = sphi 0, %s52
      %s54 = sphi 0, %s52
      %s55 = sphi 0, %s54
      %s69 = sphi 0, %s55
      %s73 = sphi 0, %s73
      %s75 = sphi 0, %s73
      %s76 = sphi 0, %s75
      %s90 = sphi 0, %s76
      %s94 = sphi 0, %s94
      %s96 = sphi 0, %s94
      %s97 = sphi 0, %s96
      %s111 = sphi 0, %s97
      %s115 = sphi 0, %s115
      %s117 = sphi 0, %s115
      %s118 = sphi 0, %s117
      %s132 = sphi 0, %s118
      %s138 = sphi 0, %s140
      %s141 = sphi 0, %s138
      %s142 = sphi 0, %s141
      %s158 = sphi 0, %s142
    $region4: #{tpu_custom_call.1} parent=1 // loop_header_branch
      %21 = sbr.rel (%p19) target = $region8
    $region5: #{tpu_custom_call.1} parent=1 // loop_body
      %s23 = ssub.s32 %s18, 1
      %s24 = ssub.s32 %s18, 2
      %s25 = sadd.s32 %s18, 1
      %s26 = ssub.s32 %s18, %s25
      %p27 = scmp.eq.s32.totalorder %s26, 0
      %s29 = sadd.s32 %s28, 1
      %s30 = scalar_select %p27, %s28, %s29
      %p33 = pneg %p27
      %p34 = scmp.eq.s32.totalorder %s18, 1
      %p35 = por %p33, %p34
      %p36 = scmp.ne.s32.totalorder %s28, %s31
      %p37 = scmp.eq.s32.totalorder %s18, 0
      %p38 = por %p36, %p37
      %p39 = scmp.ne.s32.totalorder %s28, %s31
      %p40 = scmp.eq.s32.totalorder %s23, 1
      %p41 = por %p39, %p40
      %p42 = scmp.ne.s32.totalorder %s31, %s32
      %p43 = scmp.eq.s32.totalorder %s23, 0
      %p44 = por %p42, %p43
      %p45 = scmp.ne.s32.totalorder %s31, %s32
      %p46 = scmp.eq.s32.totalorder %s24, 1
      %p47 = por %p45, %p46
      %p49 = scmp.ne.s32.totalorder %s32, %s48
      %p50 = scmp.eq.s32.totalorder %s24, 0
      %p51 = por %p49, %p50
      %s53 = sadd.s32 %s52, 1
      %p56 = scmp.eq.s32.totalorder %s18, 1
      %p57 = scmp.ne.s32.totalorder %s52, %s54
      %p58 = scmp.eq.s32.totalorder %s18, 0
      %p59 = por %p57, %p58
      %p60 = scmp.ne.s32.totalorder %s52, %s54
      %p61 = scmp.eq.s32.totalorder %s23, 1
      %p62 = por %p60, %p61
      %p63 = scmp.ne.s32.totalorder %s54, %s55
      %p64 = scmp.eq.s32.totalorder %s23, 0
      %p65 = por %p63, %p64
      %p66 = scmp.ne.s32.totalorder %s54, %s55
      %p67 = scmp.eq.s32.totalorder %s24, 1
      %p68 = por %p66, %p67
      %p70 = scmp.ne.s32.totalorder %s55, %s69
      %p71 = scmp.eq.s32.totalorder %s24, 0
      %p72 = por %p70, %p71
      %s74 = sadd.s32 %s73, 1
      %p77 = scmp.eq.s32.totalorder %s18, 1
      %p78 = scmp.ne.s32.totalorder %s73, %s75
      %p79 = scmp.eq.s32.totalorder %s18, 0
      %p80 = por %p78, %p79
      %p81 = scmp.ne.s32.totalorder %s73, %s75
      %p82 = scmp.eq.s32.totalorder %s23, 1
      %p83 = por %p81, %p82
      %p84 = scmp.ne.s32.totalorder %s75, %s76
      %p85 = scmp.eq.s32.totalorder %s23, 0
      %p86 = por %p84, %p85
      %p87 = scmp.ne.s32.totalorder %s75, %s76
      %p88 = scmp.eq.s32.totalorder %s24, 1
      %p89 = por %p87, %p88
      %p91 = scmp.ne.s32.totalorder %s76, %s90
      %p92 = scmp.eq.s32.totalorder %s24, 0
      %p93 = por %p91, %p92
      %s95 = sadd.s32 %s94, 1
      %p98 = scmp.eq.s32.totalorder %s18, 1
      %p99 = scmp.ne.s32.totalorder %s94, %s96
      %p100 = scmp.eq.s32.totalorder %s18, 0
      %p101 = por %p99, %p100
      %p102 = scmp.ne.s32.totalorder %s94, %s96
      %p103 = scmp.eq.s32.totalorder %s23, 1
      %p104 = por %p102, %p103
      %p105 = scmp.ne.s32.totalorder %s96, %s97
      %p106 = scmp.eq.s32.totalorder %s23, 0
      %p107 = por %p105, %p106
      %p108 = scmp.ne.s32.totalorder %s96, %s97
      %p109 = scmp.eq.s32.totalorder %s24, 1
      %p110 = por %p108, %p109
      %p112 = scmp.ne.s32.totalorder %s97, %s111
      %p113 = scmp.eq.s32.totalorder %s24, 0
      %p114 = por %p112, %p113
      %s116 = sadd.s32 %s115, 1
      %p119 = scmp.eq.s32.totalorder %s18, 1
      %p120 = scmp.ne.s32.totalorder %s115, %s117
      %p121 = scmp.eq.s32.totalorder %s18, 0
      %p122 = por %p120, %p121
      %p123 = scmp.ne.s32.totalorder %s115, %s117
      %p124 = scmp.eq.s32.totalorder %s23, 1
      %p125 = por %p123, %p124
      %p126 = scmp.ne.s32.totalorder %s117, %s118
      %p127 = scmp.eq.s32.totalorder %s23, 0
      %p128 = por %p126, %p127
      %p129 = scmp.ne.s32.totalorder %s117, %s118
      %p130 = scmp.eq.s32.totalorder %s24, 1
      %p131 = por %p129, %p130
      %p133 = scmp.ne.s32.totalorder %s118, %s132
      %p134 = scmp.eq.s32.totalorder %s24, 0
      %p135 = por %p133, %p134
      %s136 = ssub.s32 %s18, %s25
      %p137 = scmp.eq.s32.totalorder %s136, 0
      %s139 = sadd.s32 %s138, 1
      %s140 = scalar_select %p137, %s138, %s139
      %p143 = pneg %p137
      %p144 = scmp.eq.s32.totalorder %s18, 1
      %p145 = por %p143, %p144
      %p146 = scmp.ne.s32.totalorder %s138, %s141
      %p147 = scmp.eq.s32.totalorder %s18, 0
      %p148 = por %p146, %p147
      %p149 = scmp.ne.s32.totalorder %s138, %s141
      %p150 = scmp.eq.s32.totalorder %s23, 1
      %p151 = por %p149, %p150
      %p152 = scmp.ne.s32.totalorder %s141, %s142
      %p153 = scmp.eq.s32.totalorder %s23, 0
      %p154 = por %p152, %p153
      %p155 = scmp.ne.s32.totalorder %s141, %s142
      %p156 = scmp.eq.s32.totalorder %s24, 1
      %p157 = por %p155, %p156
      %p159 = scmp.ne.s32.totalorder %s142, %s158
      %p160 = scmp.eq.s32.totalorder %s24, 0
      %p161 = por %p159, %p160
      %p162 = scmp.le.s32.totalorder 1, %s18
      %p163 = scmp.lt.s32.totalorder %s18, 3
      %p164 = pnand %p162, %p163
      %p165 = pneg %p164
      // Predicated region
      $region9: #{tpu_custom_call.1} parent=5 // pred_check
        _
      $region10: #{tpu_custom_call.1} parent=5 // pred_check_branch
        %167 = sbr.rel (%p164) target = $region12
      $region11: #{tpu_custom_call.1} parent=5 // pred_region
        %s168 = ssub.s32 %s18, 1
        // Predicated region
        $region13: #{tpu_custom_call.1} parent=11 // pred_check
          %p169 = pneg %p65
        $region14: #{tpu_custom_call.1} parent=11 // pred_check_branch
          %171 = sbr.rel (%p169) target = $region16
        $region15: #{tpu_custom_call.1} parent=11 // pred_region
          %s173 = ssub.s32 8192, 8192
          %174 = vsyncadd [#allocation6], %s173
          %s175 = sshll.u32 [#allocation5], 4
          %s176 = int_to_ptr.vmem [resolvable:$true] %s175
          %181 = dma.hbm_to_vmem [thread:$0]  %s1, 8192, %s176, [#allocation6], 256, 256, 16
        $region16: #{tpu_custom_call.1} parent=11 // pred_fallthru
          _
        // Predicated region
        $region17: #{tpu_custom_call.1} parent=11 // pred_check
          %p182 = pneg %p86
        $region18: #{tpu_custom_call.1} parent=11 // pred_check_branch
          %184 = sbr.rel (%p182) target = $region20
        $region19: #{tpu_custom_call.1} parent=11 // pred_region
          _
        $region20: #{tpu_custom_call.1} parent=11 // pred_fallthru
          _
        // Predicated region
        $region21: #{tpu_custom_call.1} parent=11 // pred_check
          %p185 = pneg %p107
        $region22: #{tpu_custom_call.1} parent=11 // pred_check_branch
          %187 = sbr.rel (%p185) target = $region24
        $region23: #{tpu_custom_call.1} parent=11 // pred_region
          %s189 = ssub.s32 8192, 8192
          %190 = vsyncadd [#allocation6], %s189
          %s191 = sshll.u32 [#allocation7], 4
          %s192 = int_to_ptr.vmem [resolvable:$true] %s191
          %197 = dma.hbm_to_vmem [thread:$0]  %s3, 8192, %s192, [#allocation6], 128, 128, 8
        $region24: #{tpu_custom_call.1} parent=11 // pred_fallthru
          _
        // Predicated region
        $region25: #{tpu_custom_call.1} parent=11 // pred_check
          %p198 = pneg %p128
        $region26: #{tpu_custom_call.1} parent=11 // pred_check_branch
          %200 = sbr.rel (%p198) target = $region28
        $region27: #{tpu_custom_call.1} parent=11 // pred_region
          _
        $region28: #{tpu_custom_call.1} parent=11 // pred_fallthru
          _
      $region12: #{tpu_custom_call.1} parent=5 // pred_fallthru
        _
      %p201 = scmp.lt.s32.totalorder %s18, 2
      // Predicated region
      $region29: #{tpu_custom_call.1} parent=5 // pred_check
        %p202 = pneg %p201
      $region30: #{tpu_custom_call.1} parent=5 // pred_check_branch
        %204 = sbr.rel (%p202) target = $region32
      $region31: #{tpu_custom_call.1} parent=5 // pred_region
        // Predicated region
        $region33: #{tpu_custom_call.1} parent=31 // pred_check
          %p205 = pneg %p38
        $region34: #{tpu_custom_call.1} parent=31 // pred_check_branch
          %207 = sbr.rel (%p205) target = $region36
        $region35: #{tpu_custom_call.1} parent=31 // pred_region
          %s208 = sand.u32 %s28, 1
          %s209 = scalar_lea.sflag [#allocation3], %s208
          %s210 = sand.u32 %s28, 1
          %s211 = smul.addr %s210, 256
          %s212 = scalar_lea.vmem [#allocation2], %s211
          %s213 = smul.u32 16, %s18
          %s215 = ssub.s32 4096, 4096
          %216 = vsyncadd %s209, %s215
          %s217 = smul.addr %s213, 2
          %s218 = smul.addr %s217, 128
          %s219 = scalar_lea.hbm %s0, %s218
          %s220 = sshll.u32 %s212, 4
          %s221 = int_to_ptr.vmem [resolvable:$true] %s220
          %226 = dma.hbm_to_vmem [thread:$0]  %s219, 4096, %s221, %s209, 256, 256, 16
        $region36: #{tpu_custom_call.1} parent=31 // pred_fallthru
          _
      $region32: #{tpu_custom_call.1} parent=5 // pred_fallthru
        _
      %p227 = scmp.le.s32.totalorder 1, %s18
      %p228 = scmp.lt.s32.totalorder %s18, 3
      %p229 = pnand %p227, %p228
      %p230 = pneg %p229
      // Predicated region
      $region37: #{tpu_custom_call.1} parent=5 // pred_check
        _
      $region38: #{tpu_custom_call.1} parent=5 // pred_check_branch
        %232 = sbr.rel (%p229) target = $region40
      $region39: #{tpu_custom_call.1} parent=5 // pred_region
        %s233 = ssub.s32 %s18, 1
        %s234 = sand.u32 %s31, 1
        %s235 = scalar_lea.sflag [#allocation3], %s234
        %s236 = sand.u32 %s31, 1
        %s237 = smul.addr %s236, 256
        %s238 = scalar_lea.vmem [#allocation2], %s237
        // Predicated region
        $region41: #{tpu_custom_call.1} parent=39 // pred_check
          %p239 = pneg %p44
        $region42: #{tpu_custom_call.1} parent=39 // pred_check_branch
          %241 = sbr.rel (%p239) target = $region44
        $region43: #{tpu_custom_call.1} parent=39 // pred_region
          %242 = dma.done %s235, 4096
        $region44: #{tpu_custom_call.1} parent=39 // pred_fallthru
          _
        // Predicated region
        $region45: #{tpu_custom_call.1} parent=39 // pred_check
          %p243 = pneg %p65
        $region46: #{tpu_custom_call.1} parent=39 // pred_check_branch
          %245 = sbr.rel (%p243) target = $region48
        $region47: #{tpu_custom_call.1} parent=39 // pred_region
          %246 = dma.done [#allocation6], 8192
        $region48: #{tpu_custom_call.1} parent=39 // pred_fallthru
          _
        // Predicated region
        $region49: #{tpu_custom_call.1} parent=39 // pred_check
          %p247 = pneg %p107
        $region50: #{tpu_custom_call.1} parent=39 // pred_check_branch
          %249 = sbr.rel (%p247) target = $region52
        $region51: #{tpu_custom_call.1} parent=39 // pred_region
          %250 = dma.done [#allocation6], 8192
        $region52: #{tpu_custom_call.1} parent=39 // pred_fallthru
          _
        %s251 = sand.u32 %s31, 1
        %s252 = scalar_lea.sflag [#allocation3], %s251
        %s253 = sand.u32 %s31, 1
        %s254 = smul.addr %s253, 256
        %s255 = scalar_lea.vmem [#allocation2], %s254
        %p256 = pneg %p44
        %p257 = pneg %p41
        %p258 = pneg %p65
        %p259 = pneg %p62
        %p260 = pneg %p86
        %p261 = pneg %p83
        %p262 = pneg %p107
        %p263 = pneg %p104
        %p264 = pneg %p128
        %p265 = pneg %p125
        %p266 = pneg %p154
        %p267 = pneg %p151
        %s268 = sand.u32 %s141, 1
        %s269 = scalar_lea.sflag [#allocation4], %s268
        %s270 = sand.u32 %s141, 1
        %s271 = smul.addr %s270, 256
        %s272 = scalar_lea.vmem [#allocation8], %s271
        %s273 = smul.u32 16, %s23
        %s274 = smul.u32 16, %s23
        %v275 = vld [vmem:[%s238] sm:$0xff]
        %v276 = vld [vmem:[%s238 + $0x8] sm:$0xff]
        %v277 = vld [vmem:[%s238 + $0x10] sm:$0xff]
        %v278 = vld [vmem:[%s238 + $0x18] sm:$0xff]
        %v279 = vld [vmem:[%s238 + $0x20] sm:$0xff]
        %v280 = vld [vmem:[%s238 + $0x28] sm:$0xff]
        %v281 = vld [vmem:[%s238 + $0x30] sm:$0xff]
        %v282 = vld [vmem:[%s238 + $0x38] sm:$0xff]
        %v283 = vld [vmem:[%s238 + $0x40] sm:$0xff]
        %v284 = vld [vmem:[%s238 + $0x48] sm:$0xff]
        %v285 = vld [vmem:[%s238 + $0x50] sm:$0xff]
        %v286 = vld [vmem:[%s238 + $0x58] sm:$0xff]
        %v287 = vld [vmem:[%s238 + $0x60] sm:$0xff]
        %v288 = vld [vmem:[%s238 + $0x68] sm:$0xff]
        %v289 = vld [vmem:[%s238 + $0x70] sm:$0xff]
        %v290 = vld [vmem:[%s238 + $0x78] sm:$0xff]
        %v291 = vld [vmem:[%s238 + $0x80] sm:$0xff]
        %v292 = vld [vmem:[%s238 + $0x88] sm:$0xff]
        %v293 = vld [vmem:[%s238 + $0x90] sm:$0xff]
        %v294 = vld [vmem:[%s238 + $0x98] sm:$0xff]
        %v295 = vld [vmem:[%s238 + $0xa0] sm:$0xff]
        %v296 = vld [vmem:[%s238 + $0xa8] sm:$0xff]
        %v297 = vld [vmem:[%s238 + $0xb0] sm:$0xff]
        %v298 = vld [vmem:[%s238 + $0xb8] sm:$0xff]
        %v299 = vld [vmem:[%s238 + $0xc0] sm:$0xff]
        %v300 = vld [vmem:[%s238 + $0xc8] sm:$0xff]
        %v301 = vld [vmem:[%s238 + $0xd0] sm:$0xff]
        %v302 = vld [vmem:[%s238 + $0xd8] sm:$0xff]
        %v303 = vld [vmem:[%s238 + $0xe0] sm:$0xff]
        %v304 = vld [vmem:[%s238 + $0xe8] sm:$0xff]
        %v305 = vld [vmem:[%s238 + $0xf0] sm:$0xff]
        %v306 = vld [vmem:[%s238 + $0xf8] sm:$0xff]
        %v307 = vpack.c.bf16 %v277, %v275
        %v308 = vpack.c.bf16 %v278, %v276
        %v309 = vpack.c.bf16 %v281, %v279
        %v310 = vpack.c.bf16 %v282, %v280
        %v311 = vpack.c.bf16 %v285, %v283
        %v312 = vpack.c.bf16 %v286, %v284
        %v313 = vpack.c.bf16 %v289, %v287
        %v314 = vpack.c.bf16 %v290, %v288
        %v315 = vpack.c.bf16 %v293, %v291
        %v316 = vpack.c.bf16 %v294, %v292
        %v317 = vpack.c.bf16 %v297, %v295
        %v318 = vpack.c.bf16 %v298, %v296
        %v319 = vpack.c.bf16 %v301, %v299
        %v320 = vpack.c.bf16 %v302, %v300
        %v321 = vpack.c.bf16 %v305, %v303
        %v322 = vpack.c.bf16 %v306, %v304
        %v323 = vld [vmem:[#allocation5] sm:$0xff]
        %v324 = vld [vmem:[#allocation5 + $0x8] sm:$0xff]
        %v325 = vld [vmem:[#allocation5 + $0x10] sm:$0xff]
        %v326 = vld [vmem:[#allocation5 + $0x18] sm:$0xff]
        %v327 = vld [vmem:[#allocation5 + $0x20] sm:$0xff]
        %v328 = vld [vmem:[#allocation5 + $0x28] sm:$0xff]
        %v329 = vld [vmem:[#allocation5 + $0x30] sm:$0xff]
        %v330 = vld [vmem:[#allocation5 + $0x38] sm:$0xff]
        %v331 = vld [vmem:[#allocation5 + $0x40] sm:$0xff]
        %v332 = vld [vmem:[#allocation5 + $0x48] sm:$0xff]
        %v333 = vld [vmem:[#allocation5 + $0x50] sm:$0xff]
        %v334 = vld [vmem:[#allocation5 + $0x58] sm:$0xff]
        %v335 = vld [vmem:[#allocation5 + $0x60] sm:$0xff]
        %v336 = vld [vmem:[#allocation5 + $0x68] sm:$0xff]
        %v337 = vld [vmem:[#allocation5 + $0x70] sm:$0xff]
        %v338 = vld [vmem:[#allocation5 + $0x78] sm:$0xff]
        %v339 = vld [vmem:[#allocation5 + $0x80] sm:$0xff]
        %v340 = vld [vmem:[#allocation5 + $0x88] sm:$0xff]
        %v341 = vld [vmem:[#allocation5 + $0x90] sm:$0xff]
        %v342 = vld [vmem:[#allocation5 + $0x98] sm:$0xff]
        %v343 = vld [vmem:[#allocation5 + $0xa0] sm:$0xff]
        %v344 = vld [vmem:[#allocation5 + $0xa8] sm:$0xff]
        %v345 = vld [vmem:[#allocation5 + $0xb0] sm:$0xff]
        %v346 = vld [vmem:[#allocation5 + $0xb8] sm:$0xff]
        %v347 = vld [vmem:[#allocation5 + $0xc0] sm:$0xff]
        %v348 = vld [vmem:[#allocation5 + $0xc8] sm:$0xff]
        %v349 = vld [vmem:[#allocation5 + $0xd0] sm:$0xff]
        %v350 = vld [vmem:[#allocation5 + $0xd8] sm:$0xff]
        %v351 = vld [vmem:[#allocation5 + $0xe0] sm:$0xff]
        %v352 = vld [vmem:[#allocation5 + $0xe8] sm:$0xff]
        %v353 = vld [vmem:[#allocation5 + $0xf0] sm:$0xff]
        %v354 = vld [vmem:[#allocation5 + $0xf8] sm:$0xff]
        %v355 = vld [vmem:[#allocation5 + $0x100] sm:$0xff]
        %v356 = vld [vmem:[#allocation5 + $0x108] sm:$0xff]
        %v357 = vld [vmem:[#allocation5 + $0x110] sm:$0xff]
        %v358 = vld [vmem:[#allocation5 + $0x118] sm:$0xff]
        %v359 = vld [vmem:[#allocation5 + $0x120] sm:$0xff]
        %v360 = vld [vmem:[#allocation5 + $0x128] sm:$0xff]
        %v361 = vld [vmem:[#allocation5 + $0x130] sm:$0xff]
        %v362 = vld [vmem:[#allocation5 + $0x138] sm:$0xff]
        %v363 = vld [vmem:[#allocation5 + $0x140] sm:$0xff]
        %v364 = vld [vmem:[#allocation5 + $0x148] sm:$0xff]
        %v365 = vld [vmem:[#allocation5 + $0x150] sm:$0xff]
        %v366 = vld [vmem:[#allocation5 + $0x158] sm:$0xff]
        %v367 = vld [vmem:[#allocation5 + $0x160] sm:$0xff]
        %v368 = vld [vmem:[#allocation5 + $0x168] sm:$0xff]
        %v369 = vld [vmem:[#allocation5 + $0x170] sm:$0xff]
        %v370 = vld [vmem:[#allocation5 + $0x178] sm:$0xff]
        %v371 = vld [vmem:[#allocation5 + $0x180] sm:$0xff]
        %v372 = vld [vmem:[#allocation5 + $0x188] sm:$0xff]
        %v373 = vld [vmem:[#allocation5 + $0x190] sm:$0xff]
        %v374 = vld [vmem:[#allocation5 + $0x198] sm:$0xff]
        %v375 = vld [vmem:[#allocation5 + $0x1a0] sm:$0xff]
        %v376 = vld [vmem:[#allocation5 + $0x1a8] sm:$0xff]
        %v377 = vld [vmem:[#allocation5 + $0x1b0] sm:$0xff]
        %v378 = vld [vmem:[#allocation5 + $0x1b8] sm:$0xff]
        %v379 = vld [vmem:[#allocation5 + $0x1c0] sm:$0xff]
        %v380 = vld [vmem:[#allocation5 + $0x1c8] sm:$0xff]
        %v381 = vld [vmem:[#allocation5 + $0x1d0] sm:$0xff]
        %v382 = vld [vmem:[#allocation5 + $0x1d8] sm:$0xff]
        %v383 = vld [vmem:[#allocation5 + $0x1e0] sm:$0xff]
        %v384 = vld [vmem:[#allocation5 + $0x1e8] sm:$0xff]
        %v385 = vld [vmem:[#allocation5 + $0x1f0] sm:$0xff]
        %v386 = vld [vmem:[#allocation5 + $0x1f8] sm:$0xff]
        %v387 = vld [vmem:[%s2] sm:$0xf]
        %v389 = vlaneseq
        %v390 = vshrl.u32 %v389, 7
        %v391 = vsub.s32 0, %v390
        %v392 = vrot.slane %v387, %v391
        %v393 = vlaneseq
        %v394 = vshrl.u32 %v393, 7
        %v395 = vsub.s32 1, %v394
        %v396 = vrot.slane %v387, %v395
        %v397 = vlaneseq
        %v398 = vshrl.u32 %v397, 7
        %v399 = vsub.s32 2, %v398
        %v400 = vrot.slane %v387, %v399
        %v401 = vlaneseq
        %v402 = vshrl.u32 %v401, 7
        %v403 = vsub.s32 3, %v402
        %v404 = vrot.slane %v387, %v403
        %v473 = vunpack.c.l.b16 %v323
        %v474 = vunpack.c.h.b16 %v323
        %v475 = vunpack.c.l.b16 %v324
        %v476 = vunpack.c.h.b16 %v324
        %v477 = vunpack.c.l.b16 %v325
        %v478 = vunpack.c.h.b16 %v325
        %v479 = vunpack.c.l.b16 %v326
        %v480 = vunpack.c.h.b16 %v326
        %v481 = vunpack.c.l.b16 %v327
        %v482 = vunpack.c.h.b16 %v327
        %v483 = vunpack.c.l.b16 %v328
        %v484 = vunpack.c.h.b16 %v328
        %v485 = vunpack.c.l.b16 %v329
        %v486 = vunpack.c.h.b16 %v329
        %v487 = vunpack.c.l.b16 %v330
        %v488 = vunpack.c.h.b16 %v330
        %v489 = vunpack.c.l.b16 %v331
        %v490 = vunpack.c.h.b16 %v331
        %v491 = vunpack.c.l.b16 %v332
        %v492 = vunpack.c.h.b16 %v332
        %v493 = vunpack.c.l.b16 %v333
        %v494 = vunpack.c.h.b16 %v333
        %v495 = vunpack.c.l.b16 %v334
        %v496 = vunpack.c.h.b16 %v334
        %v497 = vunpack.c.l.b16 %v335
        %v498 = vunpack.c.h.b16 %v335
        %v499 = vunpack.c.l.b16 %v336
        %v500 = vunpack.c.h.b16 %v336
        %v501 = vunpack.c.l.b16 %v337
        %v502 = vunpack.c.h.b16 %v337
        %v503 = vunpack.c.l.b16 %v338
        %v504 = vunpack.c.h.b16 %v338
        %v505 = vunpack.c.l.b16 %v339
        %v506 = vunpack.c.h.b16 %v339
        %v507 = vunpack.c.l.b16 %v340
        %v508 = vunpack.c.h.b16 %v340
        %v509 = vunpack.c.l.b16 %v341
        %v510 = vunpack.c.h.b16 %v341
        %v511 = vunpack.c.l.b16 %v342
        %v512 = vunpack.c.h.b16 %v342
        %v513 = vunpack.c.l.b16 %v343
        %v514 = vunpack.c.h.b16 %v343
        %v515 = vunpack.c.l.b16 %v344
        %v516 = vunpack.c.h.b16 %v344
        %v517 = vunpack.c.l.b16 %v345
        %v518 = vunpack.c.h.b16 %v345
        %v519 = vunpack.c.l.b16 %v346
        %v520 = vunpack.c.h.b16 %v346
        %v521 = vunpack.c.l.b16 %v347
        %v522 = vunpack.c.h.b16 %v347
        %v523 = vunpack.c.l.b16 %v348
        %v524 = vunpack.c.h.b16 %v348
        %v525 = vunpack.c.l.b16 %v349
        %v526 = vunpack.c.h.b16 %v349
        %v527 = vunpack.c.l.b16 %v350
        %v528 = vunpack.c.h.b16 %v350
        %v529 = vunpack.c.l.b16 %v351
        %v530 = vunpack.c.h.b16 %v351
        %v531 = vunpack.c.l.b16 %v352
        %v532 = vunpack.c.h.b16 %v352
        %v533 = vunpack.c.l.b16 %v353
        %v534 = vunpack.c.h.b16 %v353
        %v535 = vunpack.c.l.b16 %v354
        %v536 = vunpack.c.h.b16 %v354
        %v537 = vunpack.c.l.b16 %v355
        %v538 = vunpack.c.h.b16 %v355
        %v539 = vunpack.c.l.b16 %v356
        %v540 = vunpack.c.h.b16 %v356
        %v541 = vunpack.c.l.b16 %v357
        %v542 = vunpack.c.h.b16 %v357
        %v543 = vunpack.c.l.b16 %v358
        %v544 = vunpack.c.h.b16 %v358
        %v545 = vunpack.c.l.b16 %v359
        %v546 = vunpack.c.h.b16 %v359
        %v547 = vunpack.c.l.b16 %v360
        %v548 = vunpack.c.h.b16 %v360
        %v549 = vunpack.c.l.b16 %v361
        %v550 = vunpack.c.h.b16 %v361
        %v551 = vunpack.c.l.b16 %v362
        %v552 = vunpack.c.h.b16 %v362
        %v553 = vunpack.c.l.b16 %v363
        %v554 = vunpack.c.h.b16 %v363
        %v555 = vunpack.c.l.b16 %v364
        %v556 = vunpack.c.h.b16 %v364
        %v557 = vunpack.c.l.b16 %v365
        %v558 = vunpack.c.h.b16 %v365
        %v559 = vunpack.c.l.b16 %v366
        %v560 = vunpack.c.h.b16 %v366
        %v561 = vunpack.c.l.b16 %v367
        %v562 = vunpack.c.h.b16 %v367
        %v563 = vunpack.c.l.b16 %v368
        %v564 = vunpack.c.h.b16 %v368
        %v565 = vunpack.c.l.b16 %v369
        %v566 = vunpack.c.h.b16 %v369
        %v567 = vunpack.c.l.b16 %v370
        %v568 = vunpack.c.h.b16 %v370
        %v569 = vunpack.c.l.b16 %v371
        %v570 = vunpack.c.h.b16 %v371
        %v571 = vunpack.c.l.b16 %v372
        %v572 = vunpack.c.h.b16 %v372
        %v573 = vunpack.c.l.b16 %v373
        %v574 = vunpack.c.h.b16 %v373
        %v575 = vunpack.c.l.b16 %v374
        %v576 = vunpack.c.h.b16 %v374
        %v577 = vunpack.c.l.b16 %v375
        %v578 = vunpack.c.h.b16 %v375
        %v579 = vunpack.c.l.b16 %v376
        %v580 = vunpack.c.h.b16 %v376
        %v581 = vunpack.c.l.b16 %v377
        %v582 = vunpack.c.h.b16 %v377
        %v583 = vunpack.c.l.b16 %v378
        %v584 = vunpack.c.h.b16 %v378
        %v585 = vunpack.c.l.b16 %v379
        %v586 = vunpack.c.h.b16 %v379
        %v587 = vunpack.c.l.b16 %v380
        %v588 = vunpack.c.h.b16 %v380
        %v589 = vunpack.c.l.b16 %v381
        %v590 = vunpack.c.h.b16 %v381
        %v591 = vunpack.c.l.b16 %v382
        %v592 = vunpack.c.h.b16 %v382
        %v593 = vunpack.c.l.b16 %v383
        %v594 = vunpack.c.h.b16 %v383
        %v595 = vunpack.c.l.b16 %v384
        %v596 = vunpack.c.h.b16 %v384
        %v597 = vunpack.c.l.b16 %v385
        %v598 = vunpack.c.h.b16 %v385
        %v599 = vunpack.c.l.b16 %v386
        %v600 = vunpack.c.h.b16 %v386
        %v601 = vpack.c.b16 %v477, %v473
        %v602 = vpack.c.b16 %v478, %v474
        %v603 = vpack.c.b16 %v479, %v475
        %v604 = vpack.c.b16 %v480, %v476
        %v605 = vpack.c.b16 %v485, %v481
        %v606 = vpack.c.b16 %v486, %v482
        %v607 = vpack.c.b16 %v487, %v483
        %v608 = vpack.c.b16 %v488, %v484
        %v609 = vpack.c.b16 %v493, %v489
        %v610 = vpack.c.b16 %v494, %v490
        %v611 = vpack.c.b16 %v495, %v491
        %v612 = vpack.c.b16 %v496, %v492
        %v613 = vpack.c.b16 %v501, %v497
        %v614 = vpack.c.b16 %v502, %v498
        %v615 = vpack.c.b16 %v503, %v499
        %v616 = vpack.c.b16 %v504, %v500
        %v617 = vpack.c.b16 %v509, %v505
        %v618 = vpack.c.b16 %v510, %v506
        %v619 = vpack.c.b16 %v511, %v507
        %v620 = vpack.c.b16 %v512, %v508
        %v621 = vpack.c.b16 %v517, %v513
        %v622 = vpack.c.b16 %v518, %v514
        %v623 = vpack.c.b16 %v519, %v515
        %v624 = vpack.c.b16 %v520, %v516
        %v625 = vpack.c.b16 %v525, %v521
        %v626 = vpack.c.b16 %v526, %v522
        %v627 = vpack.c.b16 %v527, %v523
        %v628 = vpack.c.b16 %v528, %v524
        %v629 = vpack.c.b16 %v533, %v529
        %v630 = vpack.c.b16 %v534, %v530
        %v631 = vpack.c.b16 %v535, %v531
        %v632 = vpack.c.b16 %v536, %v532
        %v633 = vpack.c.b16 %v541, %v537
        %v634 = vpack.c.b16 %v542, %v538
        %v635 = vpack.c.b16 %v543, %v539
        %v636 = vpack.c.b16 %v544, %v540
        %v637 = vpack.c.b16 %v549, %v545
        %v638 = vpack.c.b16 %v550, %v546
        %v639 = vpack.c.b16 %v551, %v547
        %v640 = vpack.c.b16 %v552, %v548
        %v641 = vpack.c.b16 %v557, %v553
        %v642 = vpack.c.b16 %v558, %v554
        %v643 = vpack.c.b16 %v559, %v555
        %v644 = vpack.c.b16 %v560, %v556
        %v645 = vpack.c.b16 %v565, %v561
        %v646 = vpack.c.b16 %v566, %v562
        %v647 = vpack.c.b16 %v567, %v563
        %v648 = vpack.c.b16 %v568, %v564
        %v649 = vpack.c.b16 %v573, %v569
        %v650 = vpack.c.b16 %v574, %v570
        %v651 = vpack.c.b16 %v575, %v571
        %v652 = vpack.c.b16 %v576, %v572
        %v653 = vpack.c.b16 %v581, %v577
        %v654 = vpack.c.b16 %v582, %v578
        %v655 = vpack.c.b16 %v583, %v579
        %v656 = vpack.c.b16 %v584, %v580
        %v657 = vpack.c.b16 %v589, %v585
        %v658 = vpack.c.b16 %v590, %v586
        %v659 = vpack.c.b16 %v591, %v587
        %v660 = vpack.c.b16 %v592, %v588
        %v661 = vpack.c.b16 %v597, %v593
        %v662 = vpack.c.b16 %v598, %v594
        %v663 = vpack.c.b16 %v599, %v595
        %v664 = vpack.c.b16 %v600, %v596
        %729 = vmatprep.subr.bf16.mxu0 %v602
        %730 = vmatpush1.bf16.msra.mxu0 %v601
        %731 = vmatprep.subr.bf16.mxu0 %v606
        %732 = vmatpush1.bf16.msra.mxu0 %v605
        %733 = vmatprep.subr.bf16.mxu0 %v610
        %734 = vmatpush1.bf16.msra.mxu0 %v609
        %735 = vmatprep.subr.bf16.mxu0 %v614
        %736 = vmatpush1.bf16.msra.mxu0 %v613
        %737 = vmatprep.subr.bf16.mxu0 %v618
        %738 = vmatpush1.bf16.msra.mxu0 %v617
        %739 = vmatprep.subr.bf16.mxu0 %v622
        %740 = vmatpush1.bf16.msra.mxu0 %v621
        %741 = vmatprep.subr.bf16.mxu0 %v626
        %742 = vmatpush1.bf16.msra.mxu0 %v625
        %743 = vmatprep.subr.bf16.mxu0 %v630
        %744 = vmatpush1.bf16.msra.mxu0 %v629
        %745 = vmatprep.subr.bf16.mxu0 %v634
        %746 = vmatpush1.bf16.msra.mxu0 %v633
        %747 = vmatprep.subr.bf16.mxu0 %v638
        %748 = vmatpush1.bf16.msra.mxu0 %v637
        %749 = vmatprep.subr.bf16.mxu0 %v642
        %750 = vmatpush1.bf16.msra.mxu0 %v641
        %751 = vmatprep.subr.bf16.mxu0 %v646
        %752 = vmatpush1.bf16.msra.mxu0 %v645
        %753 = vmatprep.subr.bf16.mxu0 %v650
        %754 = vmatpush1.bf16.msra.mxu0 %v649
        %755 = vmatprep.subr.bf16.mxu0 %v654
        %756 = vmatpush1.bf16.msra.mxu0 %v653
        %757 = vmatprep.subr.bf16.mxu0 %v658
        %758 = vmatpush1.bf16.msra.mxu0 %v657
        %759 = vmatprep.subr.bf16.mxu0 %v662
        %760 = vmatpush1.bf16.msra.mxu0 %v661
        %761 = vmatprep.mubr.bf16.mxu0 %v308
        %762 = vmatmul.mubr.bf16.gmra.mrb[0].mxu0 %v307
        %v763 = vpop.f32.mrb[0].mxu0
        %v764 = vadd.f32 %v392, %v763
        %v765 = vpop.f32.mrb[0].mxu0
        %v766 = vadd.f32 %v396, %v765
        %v767 = vpop.f32.mrb[0].mxu0
        %v768 = vadd.f32 %v392, %v767
        %v769 = vpop.f32.mrb[0].mxu0
        %v770 = vadd.f32 %v396, %v769
        %771 = vmatprep.mubr.bf16.mxu0 %v310
        %772 = vmatmul.mubr.bf16.gmra.mrb[0].mxu0 %v309
        %v773 = vpop.f32.mrb[0].mxu0
        %v774 = vadd.f32 %v392, %v773
        %v775 = vpop.f32.mrb[0].mxu0
        %v776 = vadd.f32 %v396, %v775
        %v777 = vpop.f32.mrb[0].mxu0
        %v778 = vadd.f32 %v392, %v777
        %v779 = vpop.f32.mrb[0].mxu0
        %v780 = vadd.f32 %v396, %v779
        %781 = vmatprep.mubr.bf16.mxu0 %v312
        %782 = vmatmul.mubr.bf16.gmra.mrb[0].mxu0 %v311
        %v783 = vpop.f32.mrb[0].mxu0
        %v784 = vadd.f32 %v392, %v783
        %v785 = vpop.f32.mrb[0].mxu0
        %v786 = vadd.f32 %v396, %v785
        %v787 = vpop.f32.mrb[0].mxu0
        %v788 = vadd.f32 %v392, %v787
        %v789 = vpop.f32.mrb[0].mxu0
        %v790 = vadd.f32 %v396, %v789
        %791 = vmatprep.mubr.bf16.mxu0 %v314
        %792 = vmatmul.mubr.bf16.gmra.mrb[0].mxu0 %v313
        %v793 = vpop.f32.mrb[0].mxu0
        %v794 = vadd.f32 %v392, %v793
        %v795 = vpop.f32.mrb[0].mxu0
        %v796 = vadd.f32 %v396, %v795
        %v797 = vpop.f32.mrb[0].mxu0
        %v798 = vadd.f32 %v392, %v797
        %v799 = vpop.f32.mrb[0].mxu0
        %v800 = vadd.f32 %v396, %v799
        %801 = vmatprep.mubr.bf16.mxu0 %v316
        %802 = vmatmul.mubr.bf16.gmra.mrb[0].mxu0 %v315
        %v803 = vpop.f32.mrb[0].mxu0
        %v804 = vadd.f32 %v392, %v803
        %v805 = vpop.f32.mrb[0].mxu0
        %v806 = vadd.f32 %v396, %v805
        %v807 = vpop.f32.mrb[0].mxu0
        %v808 = vadd.f32 %v392, %v807
        %v809 = vpop.f32.mrb[0].mxu0
        %v810 = vadd.f32 %v396, %v809
        %811 = vmatprep.mubr.bf16.mxu0 %v318
        %812 = vmatmul.mubr.bf16.gmra.mrb[0].mxu0 %v317
        %v813 = vpop.f32.mrb[0].mxu0
        %v814 = vadd.f32 %v392, %v813
        %v815 = vpop.f32.mrb[0].mxu0
        %v816 = vadd.f32 %v396, %v815
        %v817 = vpop.f32.mrb[0].mxu0
        %v818 = vadd.f32 %v392, %v817
        %v819 = vpop.f32.mrb[0].mxu0
        %v820 = vadd.f32 %v396, %v819
        %821 = vmatprep.mubr.bf16.mxu0 %v320
        %822 = vmatmul.mubr.bf16.gmra.mrb[0].mxu0 %v319
        %v823 = vpop.f32.mrb[0].mxu0
        %v824 = vadd.f32 %v392, %v823
        %v825 = vpop.f32.mrb[0].mxu0
        %v826 = vadd.f32 %v396, %v825
        %v827 = vpop.f32.mrb[0].mxu0
        %v828 = vadd.f32 %v392, %v827
        %v829 = vpop.f32.mrb[0].mxu0
        %v830 = vadd.f32 %v396, %v829
        %831 = vmatprep.mubr.bf16.mxu0 %v322
        %832 = vmatmul.mubr.bf16.gmra.mrb[0].mxu0 %v321
        %v833 = vpop.f32.mrb[0].mxu0
        %v834 = vadd.f32 %v392, %v833
        %v835 = vpop.f32.mrb[0].mxu0
        %v836 = vadd.f32 %v396, %v835
        %v837 = vpop.f32.mrb[0].mxu0
        %v838 = vadd.f32 %v392, %v837
        %v839 = vpop.f32.mrb[0].mxu0
        %v840 = vadd.f32 %v396, %v839
        %841 = vdwg.mxu0
        %842 = vmatprep.subr.bf16.mxu0 %v604
        %843 = vmatpush1.bf16.msra.mxu0 %v603
        %844 = vmatprep.subr.bf16.mxu0 %v608
        %845 = vmatpush1.bf16.msra.mxu0 %v607
        %846 = vmatprep.subr.bf16.mxu0 %v612
        %847 = vmatpush1.bf16.msra.mxu0 %v611
        %848 = vmatprep.subr.bf16.mxu0 %v616
        %849 = vmatpush1.bf16.msra.mxu0 %v615
        %850 = vmatprep.subr.bf16.mxu0 %v620
        %851 = vmatpush1.bf16.msra.mxu0 %v619
        %852 = vmatprep.subr.bf16.mxu0 %v624
        %853 = vmatpush1.bf16.msra.mxu0 %v623
        %854 = vmatprep.subr.bf16.mxu0 %v628
        %855 = vmatpush1.bf16.msra.mxu0 %v627
        %856 = vmatprep.subr.bf16.mxu0 %v632
        %857 = vmatpush1.bf16.msra.mxu0 %v631
        %858 = vmatprep.subr.bf16.mxu0 %v636
        %859 = vmatpush1.bf16.msra.mxu0 %v635
        %860 = vmatprep.subr.bf16.mxu0 %v640
        %861 = vmatpush1.bf16.msra.mxu0 %v639
        %862 = vmatprep.subr.bf16.mxu0 %v644
        %863 = vmatpush1.bf16.msra.mxu0 %v643
        %864 = vmatprep.subr.bf16.mxu0 %v648
        %865 = vmatpush1.bf16.msra.mxu0 %v647
        %866 = vmatprep.subr.bf16.mxu0 %v652
        %867 = vmatpush1.bf16.msra.mxu0 %v651
        %868 = vmatprep.subr.bf16.mxu0 %v656
        %869 = vmatpush1.bf16.msra.mxu0 %v655
        %870 = vmatprep.subr.bf16.mxu0 %v660
        %871 = vmatpush1.bf16.msra.mxu0 %v659
        %872 = vmatprep.subr.bf16.mxu0 %v664
        %873 = vmatpush1.bf16.msra.mxu0 %v663
        %874 = vmatprep.mubr.bf16.mxu0 %v308
        %875 = vmatmul.mubr.bf16.gmra.mrb[0].mxu0 %v307
        %v876 = vpop.f32.mrb[0].mxu0
        %v877 = vadd.f32 %v400, %v876
        %v878 = vpop.f32.mrb[0].mxu0
        %v879 = vadd.f32 %v404, %v878
        %v880 = vpop.f32.mrb[0].mxu0
        %v881 = vadd.f32 %v400, %v880
        %v882 = vpop.f32.mrb[0].mxu0
        %v883 = vadd.f32 %v404, %v882
        %884 = vmatprep.mubr.bf16.mxu0 %v310
        %885 = vmatmul.mubr.bf16.gmra.mrb[0].mxu0 %v309
        %v886 = vpop.f32.mrb[0].mxu0
        %v887 = vadd.f32 %v400, %v886
        %v888 = vpop.f32.mrb[0].mxu0
        %v889 = vadd.f32 %v404, %v888
        %v890 = vpop.f32.mrb[0].mxu0
        %v891 = vadd.f32 %v400, %v890
        %v892 = vpop.f32.mrb[0].mxu0
        %v893 = vadd.f32 %v404, %v892
        %894 = vmatprep.mubr.bf16.mxu0 %v312
        %895 = vmatmul.mubr.bf16.gmra.mrb[0].mxu0 %v311
        %v896 = vpop.f32.mrb[0].mxu0
        %v897 = vadd.f32 %v400, %v896
        %v898 = vpop.f32.mrb[0].mxu0
        %v899 = vadd.f32 %v404, %v898
        %v900 = vpop.f32.mrb[0].mxu0
        %v901 = vadd.f32 %v400, %v900
        %v902 = vpop.f32.mrb[0].mxu0
        %v903 = vadd.f32 %v404, %v902
        %904 = vmatprep.mubr.bf16.mxu0 %v314
        %905 = vmatmul.mubr.bf16.gmra.mrb[0].mxu0 %v313
        %v906 = vpop.f32.mrb[0].mxu0
        %v907 = vadd.f32 %v400, %v906
        %v908 = vpop.f32.mrb[0].mxu0
        %v909 = vadd.f32 %v404, %v908
        %v910 = vpop.f32.mrb[0].mxu0
        %v911 = vadd.f32 %v400, %v910
        %v912 = vpop.f32.mrb[0].mxu0
        %v913 = vadd.f32 %v404, %v912
        %914 = vmatprep.mubr.bf16.mxu0 %v316
        %915 = vmatmul.mubr.bf16.gmra.mrb[0].mxu0 %v315
        %v916 = vpop.f32.mrb[0].mxu0
        %v917 = vadd.f32 %v400, %v916
        %v918 = vpop.f32.mrb[0].mxu0
        %v919 = vadd.f32 %v404, %v918
        %v920 = vpop.f32.mrb[0].mxu0
        %v921 = vadd.f32 %v400, %v920
        %v922 = vpop.f32.mrb[0].mxu0
        %v923 = vadd.f32 %v404, %v922
        %924 = vmatprep.mubr.bf16.mxu0 %v318
        %925 = vmatmul.mubr.bf16.gmra.mrb[0].mxu0 %v317
        %v926 = vpop.f32.mrb[0].mxu0
        %v927 = vadd.f32 %v400, %v926
        %v928 = vpop.f32.mrb[0].mxu0
        %v929 = vadd.f32 %v404, %v928
        %v930 = vpop.f32.mrb[0].mxu0
        %v931 = vadd.f32 %v400, %v930
        %v932 = vpop.f32.mrb[0].mxu0
        %v933 = vadd.f32 %v404, %v932
        %934 = vmatprep.mubr.bf16.mxu0 %v320
        %935 = vmatmul.mubr.bf16.gmra.mrb[0].mxu0 %v319
        %v936 = vpop.f32.mrb[0].mxu0
        %v937 = vadd.f32 %v400, %v936
        %v938 = vpop.f32.mrb[0].mxu0
        %v939 = vadd.f32 %v404, %v938
        %v940 = vpop.f32.mrb[0].mxu0
        %v941 = vadd.f32 %v400, %v940
        %v942 = vpop.f32.mrb[0].mxu0
        %v943 = vadd.f32 %v404, %v942
        %944 = vmatprep.mubr.bf16.mxu0 %v322
        %945 = vmatmul.mubr.bf16.gmra.mrb[0].mxu0 %v321
        %v946 = vpop.f32.mrb[0].mxu0
        %v947 = vadd.f32 %v400, %v946
        %v948 = vpop.f32.mrb[0].mxu0
        %v949 = vadd.f32 %v404, %v948
        %v950 = vpop.f32.mrb[0].mxu0
        %v951 = vadd.f32 %v400, %v950
        %v952 = vpop.f32.mrb[0].mxu0
        %v953 = vadd.f32 %v404, %v952
        %954 = vdwg.mxu0
        %v955 = vmax.f32 %v764, 0.0
        %v956 = vmax.f32 %v766, 0.0
        %v957 = vmax.f32 %v877, 0.0
        %v958 = vmax.f32 %v879, 0.0
        %v959 = vmax.f32 %v768, 0.0
        %v960 = vmax.f32 %v770, 0.0
        %v961 = vmax.f32 %v881, 0.0
        %v962 = vmax.f32 %v883, 0.0
        %v963 = vmax.f32 %v774, 0.0
        %v964 = vmax.f32 %v776, 0.0
        %v965 = vmax.f32 %v887, 0.0
        %v966 = vmax.f32 %v889, 0.0
        %v967 = vmax.f32 %v778, 0.0
        %v968 = vmax.f32 %v780, 0.0
        %v969 = vmax.f32 %v891, 0.0
        %v970 = vmax.f32 %v893, 0.0
        %v971 = vmax.f32 %v784, 0.0
        %v972 = vmax.f32 %v786, 0.0
        %v973 = vmax.f32 %v897, 0.0
        %v974 = vmax.f32 %v899, 0.0
        %v975 = vmax.f32 %v788, 0.0
        %v976 = vmax.f32 %v790, 0.0
        %v977 = vmax.f32 %v901, 0.0
        %v978 = vmax.f32 %v903, 0.0
        %v979 = vmax.f32 %v794, 0.0
        %v980 = vmax.f32 %v796, 0.0
        %v981 = vmax.f32 %v907, 0.0
        %v982 = vmax.f32 %v909, 0.0
        %v983 = vmax.f32 %v798, 0.0
        %v984 = vmax.f32 %v800, 0.0
        %v985 = vmax.f32 %v911, 0.0
        %v986 = vmax.f32 %v913, 0.0
        %v987 = vmax.f32 %v804, 0.0
        %v988 = vmax.f32 %v806, 0.0
        %v989 = vmax.f32 %v917, 0.0
        %v990 = vmax.f32 %v919, 0.0
        %v991 = vmax.f32 %v808, 0.0
        %v992 = vmax.f32 %v810, 0.0
        %v993 = vmax.f32 %v921, 0.0
        %v994 = vmax.f32 %v923, 0.0
        %v995 = vmax.f32 %v814, 0.0
        %v996 = vmax.f32 %v816, 0.0
        %v997 = vmax.f32 %v927, 0.0
        %v998 = vmax.f32 %v929, 0.0
        %v999 = vmax.f32 %v818, 0.0
        %v1000 = vmax.f32 %v820, 0.0
        %v1001 = vmax.f32 %v931, 0.0
        %v1002 = vmax.f32 %v933, 0.0
        %v1003 = vmax.f32 %v824, 0.0
        %v1004 = vmax.f32 %v826, 0.0
        %v1005 = vmax.f32 %v937, 0.0
        %v1006 = vmax.f32 %v939, 0.0
        %v1007 = vmax.f32 %v828, 0.0
        %v1008 = vmax.f32 %v830, 0.0
        %v1009 = vmax.f32 %v941, 0.0
        %v1010 = vmax.f32 %v943, 0.0
        %v1011 = vmax.f32 %v834, 0.0
        %v1012 = vmax.f32 %v836, 0.0
        %v1013 = vmax.f32 %v947, 0.0
        %v1014 = vmax.f32 %v949, 0.0
        %v1015 = vmax.f32 %v838, 0.0
        %v1016 = vmax.f32 %v840, 0.0
        %v1017 = vmax.f32 %v951, 0.0
        %v1018 = vmax.f32 %v953, 0.0
        %v1019 = vpack.c.bf16 %v959, %v955
        %v1020 = vpack.c.bf16 %v960, %v956
        %v1021 = vpack.c.bf16 %v961, %v957
        %v1022 = vpack.c.bf16 %v962, %v958
        %v1023 = vpack.c.bf16 %v967, %v963
        %v1024 = vpack.c.bf16 %v968, %v964
        %v1025 = vpack.c.bf16 %v969, %v965
        %v1026 = vpack.c.bf16 %v970, %v966
        %v1027 = vpack.c.bf16 %v975, %v971
        %v1028 = vpack.c.bf16 %v976, %v972
        %v1029 = vpack.c.bf16 %v977, %v973
        %v1030 = vpack.c.bf16 %v978, %v974
        %v1031 = vpack.c.bf16 %v983, %v979
        %v1032 = vpack.c.bf16 %v984, %v980
        %v1033 = vpack.c.bf16 %v985, %v981
        %v1034 = vpack.c.bf16 %v986, %v982
        %v1035 = vpack.c.bf16 %v991, %v987
        %v1036 = vpack.c.bf16 %v992, %v988
        %v1037 = vpack.c.bf16 %v993, %v989
        %v1038 = vpack.c.bf16 %v994, %v990
        %v1039 = vpack.c.bf16 %v999, %v995
        %v1040 = vpack.c.bf16 %v1000, %v996
        %v1041 = vpack.c.bf16 %v1001, %v997
        %v1042 = vpack.c.bf16 %v1002, %v998
        %v1043 = vpack.c.bf16 %v1007, %v1003
        %v1044 = vpack.c.bf16 %v1008, %v1004
        %v1045 = vpack.c.bf16 %v1009, %v1005
        %v1046 = vpack.c.bf16 %v1010, %v1006
        %v1047 = vpack.c.bf16 %v1015, %v1011
        %v1048 = vpack.c.bf16 %v1016, %v1012
        %v1049 = vpack.c.bf16 %v1017, %v1013
        %v1050 = vpack.c.bf16 %v1018, %v1014
        %v1051 = vld [vmem:[#allocation7] sm:$0xff]
        %v1052 = vld [vmem:[#allocation7 + $0x8] sm:$0xff]
        %v1053 = vld [vmem:[#allocation7 + $0x10] sm:$0xff]
        %v1054 = vld [vmem:[#allocation7 + $0x18] sm:$0xff]
        %v1055 = vld [vmem:[#allocation7 + $0x20] sm:$0xff]
        %v1056 = vld [vmem:[#allocation7 + $0x28] sm:$0xff]
        %v1057 = vld [vmem:[#allocation7 + $0x30] sm:$0xff]
        %v1058 = vld [vmem:[#allocation7 + $0x38] sm:$0xff]
        %v1059 = vld [vmem:[#allocation7 + $0x40] sm:$0xff]
        %v1060 = vld [vmem:[#allocation7 + $0x48] sm:$0xff]
        %v1061 = vld [vmem:[#allocation7 + $0x50] sm:$0xff]
        %v1062 = vld [vmem:[#allocation7 + $0x58] sm:$0xff]
        %v1063 = vld [vmem:[#allocation7 + $0x60] sm:$0xff]
        %v1064 = vld [vmem:[#allocation7 + $0x68] sm:$0xff]
        %v1065 = vld [vmem:[#allocation7 + $0x70] sm:$0xff]
        %v1066 = vld [vmem:[#allocation7 + $0x78] sm:$0xff]
        %v1067 = vld [vmem:[#allocation7 + $0x80] sm:$0xff]
        %v1068 = vld [vmem:[#allocation7 + $0x88] sm:$0xff]
        %v1069 = vld [vmem:[#allocation7 + $0x90] sm:$0xff]
        %v1070 = vld [vmem:[#allocation7 + $0x98] sm:$0xff]
        %v1071 = vld [vmem:[#allocation7 + $0xa0] sm:$0xff]
        %v1072 = vld [vmem:[#allocation7 + $0xa8] sm:$0xff]
        %v1073 = vld [vmem:[#allocation7 + $0xb0] sm:$0xff]
        %v1074 = vld [vmem:[#allocation7 + $0xb8] sm:$0xff]
        %v1075 = vld [vmem:[#allocation7 + $0xc0] sm:$0xff]
        %v1076 = vld [vmem:[#allocation7 + $0xc8] sm:$0xff]
        %v1077 = vld [vmem:[#allocation7 + $0xd0] sm:$0xff]
        %v1078 = vld [vmem:[#allocation7 + $0xd8] sm:$0xff]
        %v1079 = vld [vmem:[#allocation7 + $0xe0] sm:$0xff]
        %v1080 = vld [vmem:[#allocation7 + $0xe8] sm:$0xff]
        %v1081 = vld [vmem:[#allocation7 + $0xf0] sm:$0xff]
        %v1082 = vld [vmem:[#allocation7 + $0xf8] sm:$0xff]
        %v1083 = vld [vmem:[#allocation7 + $0x100] sm:$0xff]
        %v1084 = vld [vmem:[#allocation7 + $0x108] sm:$0xff]
        %v1085 = vld [vmem:[#allocation7 + $0x110] sm:$0xff]
        %v1086 = vld [vmem:[#allocation7 + $0x118] sm:$0xff]
        %v1087 = vld [vmem:[#allocation7 + $0x120] sm:$0xff]
        %v1088 = vld [vmem:[#allocation7 + $0x128] sm:$0xff]
        %v1089 = vld [vmem:[#allocation7 + $0x130] sm:$0xff]
        %v1090 = vld [vmem:[#allocation7 + $0x138] sm:$0xff]
        %v1091 = vld [vmem:[#allocation7 + $0x140] sm:$0xff]
        %v1092 = vld [vmem:[#allocation7 + $0x148] sm:$0xff]
        %v1093 = vld [vmem:[#allocation7 + $0x150] sm:$0xff]
        %v1094 = vld [vmem:[#allocation7 + $0x158] sm:$0xff]
        %v1095 = vld [vmem:[#allocation7 + $0x160] sm:$0xff]
        %v1096 = vld [vmem:[#allocation7 + $0x168] sm:$0xff]
        %v1097 = vld [vmem:[#allocation7 + $0x170] sm:$0xff]
        %v1098 = vld [vmem:[#allocation7 + $0x178] sm:$0xff]
        %v1099 = vld [vmem:[#allocation7 + $0x180] sm:$0xff]
        %v1100 = vld [vmem:[#allocation7 + $0x188] sm:$0xff]
        %v1101 = vld [vmem:[#allocation7 + $0x190] sm:$0xff]
        %v1102 = vld [vmem:[#allocation7 + $0x198] sm:$0xff]
        %v1103 = vld [vmem:[#allocation7 + $0x1a0] sm:$0xff]
        %v1104 = vld [vmem:[#allocation7 + $0x1a8] sm:$0xff]
        %v1105 = vld [vmem:[#allocation7 + $0x1b0] sm:$0xff]
        %v1106 = vld [vmem:[#allocation7 + $0x1b8] sm:$0xff]
        %v1107 = vld [vmem:[#allocation7 + $0x1c0] sm:$0xff]
        %v1108 = vld [vmem:[#allocation7 + $0x1c8] sm:$0xff]
        %v1109 = vld [vmem:[#allocation7 + $0x1d0] sm:$0xff]
        %v1110 = vld [vmem:[#allocation7 + $0x1d8] sm:$0xff]
        %v1111 = vld [vmem:[#allocation7 + $0x1e0] sm:$0xff]
        %v1112 = vld [vmem:[#allocation7 + $0x1e8] sm:$0xff]
        %v1113 = vld [vmem:[#allocation7 + $0x1f0] sm:$0xff]
        %v1114 = vld [vmem:[#allocation7 + $0x1f8] sm:$0xff]
        %v1115 = vld [vmem:[%s4] sm:$0x3]
        %v1117 = vlaneseq
        %v1118 = vshrl.u32 %v1117, 7
        %v1119 = vsub.s32 0, %v1118
        %v1120 = vrot.slane %v1115, %v1119
        %v1121 = vlaneseq
        %v1122 = vshrl.u32 %v1121, 7
        %v1123 = vsub.s32 1, %v1122
        %v1124 = vrot.slane %v1115, %v1123
        %v1191 = vunpack.c.l.b16 %v1051
        %v1192 = vunpack.c.h.b16 %v1051
        %v1193 = vunpack.c.l.b16 %v1052
        %v1194 = vunpack.c.h.b16 %v1052
        %v1195 = vunpack.c.l.b16 %v1053
        %v1196 = vunpack.c.h.b16 %v1053
        %v1197 = vunpack.c.l.b16 %v1054
        %v1198 = vunpack.c.h.b16 %v1054
        %v1199 = vunpack.c.l.b16 %v1055
        %v1200 = vunpack.c.h.b16 %v1055
        %v1201 = vunpack.c.l.b16 %v1056
        %v1202 = vunpack.c.h.b16 %v1056
        %v1203 = vunpack.c.l.b16 %v1057
        %v1204 = vunpack.c.h.b16 %v1057
        %v1205 = vunpack.c.l.b16 %v1058
        %v1206 = vunpack.c.h.b16 %v1058
        %v1207 = vunpack.c.l.b16 %v1059
        %v1208 = vunpack.c.h.b16 %v1059
        %v1209 = vunpack.c.l.b16 %v1060
        %v1210 = vunpack.c.h.b16 %v1060
        %v1211 = vunpack.c.l.b16 %v1061
        %v1212 = vunpack.c.h.b16 %v1061
        %v1213 = vunpack.c.l.b16 %v1062
        %v1214 = vunpack.c.h.b16 %v1062
        %v1215 = vunpack.c.l.b16 %v1063
        %v1216 = vunpack.c.h.b16 %v1063
        %v1217 = vunpack.c.l.b16 %v1064
        %v1218 = vunpack.c.h.b16 %v1064
        %v1219 = vunpack.c.l.b16 %v1065
        %v1220 = vunpack.c.h.b16 %v1065
        %v1221 = vunpack.c.l.b16 %v1066
        %v1222 = vunpack.c.h.b16 %v1066
        %v1223 = vunpack.c.l.b16 %v1067
        %v1224 = vunpack.c.h.b16 %v1067
        %v1225 = vunpack.c.l.b16 %v1068
        %v1226 = vunpack.c.h.b16 %v1068
        %v1227 = vunpack.c.l.b16 %v1069
        %v1228 = vunpack.c.h.b16 %v1069
        %v1229 = vunpack.c.l.b16 %v1070
        %v1230 = vunpack.c.h.b16 %v1070
        %v1231 = vunpack.c.l.b16 %v1071
        %v1232 = vunpack.c.h.b16 %v1071
        %v1233 = vunpack.c.l.b16 %v1072
        %v1234 = vunpack.c.h.b16 %v1072
        %v1235 = vunpack.c.l.b16 %v1073
        %v1236 = vunpack.c.h.b16 %v1073
        %v1237 = vunpack.c.l.b16 %v1074
        %v1238 = vunpack.c.h.b16 %v1074
        %v1239 = vunpack.c.l.b16 %v1075
        %v1240 = vunpack.c.h.b16 %v1075
        %v1241 = vunpack.c.l.b16 %v1076
        %v1242 = vunpack.c.h.b16 %v1076
        %v1243 = vunpack.c.l.b16 %v1077
        %v1244 = vunpack.c.h.b16 %v1077
        %v1245 = vunpack.c.l.b16 %v1078
        %v1246 = vunpack.c.h.b16 %v1078
        %v1247 = vunpack.c.l.b16 %v1079
        %v1248 = vunpack.c.h.b16 %v1079
        %v1249 = vunpack.c.l.b16 %v1080
        %v1250 = vunpack.c.h.b16 %v1080
        %v1251 = vunpack.c.l.b16 %v1081
        %v1252 = vunpack.c.h.b16 %v1081
        %v1253 = vunpack.c.l.b16 %v1082
        %v1254 = vunpack.c.h.b16 %v1082
        %v1255 = vunpack.c.l.b16 %v1083
        %v1256 = vunpack.c.h.b16 %v1083
        %v1257 = vunpack.c.l.b16 %v1084
        %v1258 = vunpack.c.h.b16 %v1084
        %v1259 = vunpack.c.l.b16 %v1085
        %v1260 = vunpack.c.h.b16 %v1085
        %v1261 = vunpack.c.l.b16 %v1086
        %v1262 = vunpack.c.h.b16 %v1086
        %v1263 = vunpack.c.l.b16 %v1087
        %v1264 = vunpack.c.h.b16 %v1087
        %v1265 = vunpack.c.l.b16 %v1088
        %v1266 = vunpack.c.h.b16 %v1088
        %v1267 = vunpack.c.l.b16 %v1089
        %v1268 = vunpack.c.h.b16 %v1089
        %v1269 = vunpack.c.l.b16 %v1090
        %v1270 = vunpack.c.h.b16 %v1090
        %v1271 = vunpack.c.l.b16 %v1091
        %v1272 = vunpack.c.h.b16 %v1091
        %v1273 = vunpack.c.l.b16 %v1092
        %v1274 = vunpack.c.h.b16 %v1092
        %v1275 = vunpack.c.l.b16 %v1093
        %v1276 = vunpack.c.h.b16 %v1093
        %v1277 = vunpack.c.l.b16 %v1094
        %v1278 = vunpack.c.h.b16 %v1094
        %v1279 = vunpack.c.l.b16 %v1095
        %v1280 = vunpack.c.h.b16 %v1095
        %v1281 = vunpack.c.l.b16 %v1096
        %v1282 = vunpack.c.h.b16 %v1096
        %v1283 = vunpack.c.l.b16 %v1097
        %v1284 = vunpack.c.h.b16 %v1097
        %v1285 = vunpack.c.l.b16 %v1098
        %v1286 = vunpack.c.h.b16 %v1098
        %v1287 = vunpack.c.l.b16 %v1099
        %v1288 = vunpack.c.h.b16 %v1099
        %v1289 = vunpack.c.l.b16 %v1100
        %v1290 = vunpack.c.h.b16 %v1100
        %v1291 = vunpack.c.l.b16 %v1101
        %v1292 = vunpack.c.h.b16 %v1101
        %v1293 = vunpack.c.l.b16 %v1102
        %v1294 = vunpack.c.h.b16 %v1102
        %v1295 = vunpack.c.l.b16 %v1103
        %v1296 = vunpack.c.h.b16 %v1103
        %v1297 = vunpack.c.l.b16 %v1104
        %v1298 = vunpack.c.h.b16 %v1104
        %v1299 = vunpack.c.l.b16 %v1105
        %v1300 = vunpack.c.h.b16 %v1105
        %v1301 = vunpack.c.l.b16 %v1106
        %v1302 = vunpack.c.h.b16 %v1106
        %v1303 = vunpack.c.l.b16 %v1107
        %v1304 = vunpack.c.h.b16 %v1107
        %v1305 = vunpack.c.l.b16 %v1108
        %v1306 = vunpack.c.h.b16 %v1108
        %v1307 = vunpack.c.l.b16 %v1109
        %v1308 = vunpack.c.h.b16 %v1109
        %v1309 = vunpack.c.l.b16 %v1110
        %v1310 = vunpack.c.h.b16 %v1110
        %v1311 = vunpack.c.l.b16 %v1111
        %v1312 = vunpack.c.h.b16 %v1111
        %v1313 = vunpack.c.l.b16 %v1112
        %v1314 = vunpack.c.h.b16 %v1112
        %v1315 = vunpack.c.l.b16 %v1113
        %v1316 = vunpack.c.h.b16 %v1113
        %v1317 = vunpack.c.l.b16 %v1114
        %v1318 = vunpack.c.h.b16 %v1114
        %v1319 = vpack.c.b16 %v1193, %v1191
        %v1320 = vpack.c.b16 %v1194, %v1192
        %v1321 = vpack.c.b16 %v1197, %v1195
        %v1322 = vpack.c.b16 %v1198, %v1196
        %v1323 = vpack.c.b16 %v1201, %v1199
        %v1324 = vpack.c.b16 %v1202, %v1200
        %v1325 = vpack.c.b16 %v1205, %v1203
        %v1326 = vpack.c.b16 %v1206, %v1204
        %v1327 = vpack.c.b16 %v1209, %v1207
        %v1328 = vpack.c.b16 %v1210, %v1208
        %v1329 = vpack.c.b16 %v1213, %v1211
        %v1330 = vpack.c.b16 %v1214, %v1212
        %v1331 = vpack.c.b16 %v1217, %v1215
        %v1332 = vpack.c.b16 %v1218, %v1216
        %v1333 = vpack.c.b16 %v1221, %v1219
        %v1334 = vpack.c.b16 %v1222, %v1220
        %v1335 = vpack.c.b16 %v1225, %v1223
        %v1336 = vpack.c.b16 %v1226, %v1224
        %v1337 = vpack.c.b16 %v1229, %v1227
        %v1338 = vpack.c.b16 %v1230, %v1228
        %v1339 = vpack.c.b16 %v1233, %v1231
        %v1340 = vpack.c.b16 %v1234, %v1232
        %v1341 = vpack.c.b16 %v1237, %v1235
        %v1342 = vpack.c.b16 %v1238, %v1236
        %v1343 = vpack.c.b16 %v1241, %v1239
        %v1344 = vpack.c.b16 %v1242, %v1240
        %v1345 = vpack.c.b16 %v1245, %v1243
        %v1346 = vpack.c.b16 %v1246, %v1244
        %v1347 = vpack.c.b16 %v1249, %v1247
        %v1348 = vpack.c.b16 %v1250, %v1248
        %v1349 = vpack.c.b16 %v1253, %v1251
        %v1350 = vpack.c.b16 %v1254, %v1252
        %v1351 = vpack.c.b16 %v1257, %v1255
        %v1352 = vpack.c.b16 %v1258, %v1256
        %v1353 = vpack.c.b16 %v1261, %v1259
        %v1354 = vpack.c.b16 %v1262, %v1260
        %v1355 = vpack.c.b16 %v1265, %v1263
        %v1356 = vpack.c.b16 %v1266, %v1264
        %v1357 = vpack.c.b16 %v1269, %v1267
        %v1358 = vpack.c.b16 %v1270, %v1268
        %v1359 = vpack.c.b16 %v1273, %v1271
        %v1360 = vpack.c.b16 %v1274, %v1272
        %v1361 = vpack.c.b16 %v1277, %v1275
        %v1362 = vpack.c.b16 %v1278, %v1276
        %v1363 = vpack.c.b16 %v1281, %v1279
        %v1364 = vpack.c.b16 %v1282, %v1280
        %v1365 = vpack.c.b16 %v1285, %v1283
        %v1366 = vpack.c.b16 %v1286, %v1284
        %v1367 = vpack.c.b16 %v1289, %v1287
        %v1368 = vpack.c.b16 %v1290, %v1288
        %v1369 = vpack.c.b16 %v1293, %v1291
        %v1370 = vpack.c.b16 %v1294, %v1292
        %v1371 = vpack.c.b16 %v1297, %v1295
        %v1372 = vpack.c.b16 %v1298, %v1296
        %v1373 = vpack.c.b16 %v1301, %v1299
        %v1374 = vpack.c.b16 %v1302, %v1300
        %v1375 = vpack.c.b16 %v1305, %v1303
        %v1376 = vpack.c.b16 %v1306, %v1304
        %v1377 = vpack.c.b16 %v1309, %v1307
        %v1378 = vpack.c.b16 %v1310, %v1308
        %v1379 = vpack.c.b16 %v1313, %v1311
        %v1380 = vpack.c.b16 %v1314, %v1312
        %v1381 = vpack.c.b16 %v1317, %v1315
        %v1382 = vpack.c.b16 %v1318, %v1316
        %1447 = vmatprep.subr.bf16.mxu0 %v1320
        %1448 = vmatpush1.bf16.msra.mxu0 %v1319
        %1449 = vmatprep.subr.bf16.mxu0 %v1322
        %1450 = vmatpush1.bf16.msra.mxu0 %v1321
        %1451 = vmatprep.subr.bf16.mxu0 %v1324
        %1452 = vmatpush1.bf16.msra.mxu0 %v1323
        %1453 = vmatprep.subr.bf16.mxu0 %v1326
        %1454 = vmatpush1.bf16.msra.mxu0 %v1325
        %1455 = vmatprep.subr.bf16.mxu0 %v1328
        %1456 = vmatpush1.bf16.msra.mxu0 %v1327
        %1457 = vmatprep.subr.bf16.mxu0 %v1330
        %1458 = vmatpush1.bf16.msra.mxu0 %v1329
        %1459 = vmatprep.subr.bf16.mxu0 %v1332
        %1460 = vmatpush1.bf16.msra.mxu0 %v1331
        %1461 = vmatprep.subr.bf16.mxu0 %v1334
        %1462 = vmatpush1.bf16.msra.mxu0 %v1333
        %1463 = vmatprep.subr.bf16.mxu0 %v1336
        %1464 = vmatpush1.bf16.msra.mxu0 %v1335
        %1465 = vmatprep.subr.bf16.mxu0 %v1338
        %1466 = vmatpush1.bf16.msra.mxu0 %v1337
        %1467 = vmatprep.subr.bf16.mxu0 %v1340
        %1468 = vmatpush1.bf16.msra.mxu0 %v1339
        %1469 = vmatprep.subr.bf16.mxu0 %v1342
        %1470 = vmatpush1.bf16.msra.mxu0 %v1341
        %1471 = vmatprep.subr.bf16.mxu0 %v1344
        %1472 = vmatpush1.bf16.msra.mxu0 %v1343
        %1473 = vmatprep.subr.bf16.mxu0 %v1346
        %1474 = vmatpush1.bf16.msra.mxu0 %v1345
        %1475 = vmatprep.subr.bf16.mxu0 %v1348
        %1476 = vmatpush1.bf16.msra.mxu0 %v1347
        %1477 = vmatprep.subr.bf16.mxu0 %v1350
        %1478 = vmatpush1.bf16.msra.mxu0 %v1349
        %1479 = vmatprep.mubr.bf16.mxu0 %v1020
        %1480 = vmatmul.mubr.bf16.gmra.mrb[0].mxu0 %v1019
        %v1481 = vpop.f32.mrb[0].mxu0
        %v1482 = vadd.f32 %v1120, %v1481
        %v1483 = vpop.f32.mrb[0].mxu0
        %v1484 = vadd.f32 %v1124, %v1483
        %v1485 = vpop.f32.mrb[0].mxu0
        %v1486 = vadd.f32 %v1120, %v1485
        %v1487 = vpop.f32.mrb[0].mxu0
        %v1488 = vadd.f32 %v1124, %v1487
        %1489 = vmatprep.mubr.bf16.mxu0 %v1024
        %1490 = vmatmul.mubr.bf16.gmra.mrb[0].mxu0 %v1023
        %v1491 = vpop.f32.mrb[0].mxu0
        %v1492 = vadd.f32 %v1120, %v1491
        %v1493 = vpop.f32.mrb[0].mxu0
        %v1494 = vadd.f32 %v1124, %v1493
        %v1495 = vpop.f32.mrb[0].mxu0
        %v1496 = vadd.f32 %v1120, %v1495
        %v1497 = vpop.f32.mrb[0].mxu0
        %v1498 = vadd.f32 %v1124, %v1497
        %1499 = vmatprep.mubr.bf16.mxu0 %v1028
        %1500 = vmatmul.mubr.bf16.gmra.mrb[0].mxu0 %v1027
        %v1501 = vpop.f32.mrb[0].mxu0
        %v1502 = vadd.f32 %v1120, %v1501
        %v1503 = vpop.f32.mrb[0].mxu0
        %v1504 = vadd.f32 %v1124, %v1503
        %v1505 = vpop.f32.mrb[0].mxu0
        %v1506 = vadd.f32 %v1120, %v1505
        %v1507 = vpop.f32.mrb[0].mxu0
        %v1508 = vadd.f32 %v1124, %v1507
        %1509 = vmatprep.mubr.bf16.mxu0 %v1032
        %1510 = vmatmul.mubr.bf16.gmra.mrb[0].mxu0 %v1031
        %v1511 = vpop.f32.mrb[0].mxu0
        %v1512 = vadd.f32 %v1120, %v1511
        %v1513 = vpop.f32.mrb[0].mxu0
        %v1514 = vadd.f32 %v1124, %v1513
        %v1515 = vpop.f32.mrb[0].mxu0
        %v1516 = vadd.f32 %v1120, %v1515
        %v1517 = vpop.f32.mrb[0].mxu0
        %v1518 = vadd.f32 %v1124, %v1517
        %1519 = vmatprep.mubr.bf16.mxu0 %v1036
        %1520 = vmatmul.mubr.bf16.gmra.mrb[0].mxu0 %v1035
        %v1521 = vpop.f32.mrb[0].mxu0
        %v1522 = vadd.f32 %v1120, %v1521
        %v1523 = vpop.f32.mrb[0].mxu0
        %v1524 = vadd.f32 %v1124, %v1523
        %v1525 = vpop.f32.mrb[0].mxu0
        %v1526 = vadd.f32 %v1120, %v1525
        %v1527 = vpop.f32.mrb[0].mxu0
        %v1528 = vadd.f32 %v1124, %v1527
        %1529 = vmatprep.mubr.bf16.mxu0 %v1040
        %1530 = vmatmul.mubr.bf16.gmra.mrb[0].mxu0 %v1039
        %v1531 = vpop.f32.mrb[0].mxu0
        %v1532 = vadd.f32 %v1120, %v1531
        %v1533 = vpop.f32.mrb[0].mxu0
        %v1534 = vadd.f32 %v1124, %v1533
        %v1535 = vpop.f32.mrb[0].mxu0
        %v1536 = vadd.f32 %v1120, %v1535
        %v1537 = vpop.f32.mrb[0].mxu0
        %v1538 = vadd.f32 %v1124, %v1537
        %1539 = vmatprep.mubr.bf16.mxu0 %v1044
        %1540 = vmatmul.mubr.bf16.gmra.mrb[0].mxu0 %v1043
        %v1541 = vpop.f32.mrb[0].mxu0
        %v1542 = vadd.f32 %v1120, %v1541
        %v1543 = vpop.f32.mrb[0].mxu0
        %v1544 = vadd.f32 %v1124, %v1543
        %v1545 = vpop.f32.mrb[0].mxu0
        %v1546 = vadd.f32 %v1120, %v1545
        %v1547 = vpop.f32.mrb[0].mxu0
        %v1548 = vadd.f32 %v1124, %v1547
        %1549 = vmatprep.mubr.bf16.mxu0 %v1048
        %1550 = vmatmul.mubr.bf16.gmra.mrb[0].mxu0 %v1047
        %v1551 = vpop.f32.mrb[0].mxu0
        %v1552 = vadd.f32 %v1120, %v1551
        %v1553 = vpop.f32.mrb[0].mxu0
        %v1554 = vadd.f32 %v1124, %v1553
        %v1555 = vpop.f32.mrb[0].mxu0
        %v1556 = vadd.f32 %v1120, %v1555
        %v1557 = vpop.f32.mrb[0].mxu0
        %v1558 = vadd.f32 %v1124, %v1557
        %1559 = vdwg.mxu0
        %1560 = vmatprep.subr.bf16.mxu0 %v1352
        %1561 = vmatpush1.bf16.msra.mxu0 %v1351
        %1562 = vmatprep.subr.bf16.mxu0 %v1354
        %1563 = vmatpush1.bf16.msra.mxu0 %v1353
        %1564 = vmatprep.subr.bf16.mxu0 %v1356
        %1565 = vmatpush1.bf16.msra.mxu0 %v1355
        %1566 = vmatprep.subr.bf16.mxu0 %v1358
        %1567 = vmatpush1.bf16.msra.mxu0 %v1357
        %1568 = vmatprep.subr.bf16.mxu0 %v1360
        %1569 = vmatpush1.bf16.msra.mxu0 %v1359
        %1570 = vmatprep.subr.bf16.mxu0 %v1362
        %1571 = vmatpush1.bf16.msra.mxu0 %v1361
        %1572 = vmatprep.subr.bf16.mxu0 %v1364
        %1573 = vmatpush1.bf16.msra.mxu0 %v1363
        %1574 = vmatprep.subr.bf16.mxu0 %v1366
        %1575 = vmatpush1.bf16.msra.mxu0 %v1365
        %1576 = vmatprep.subr.bf16.mxu0 %v1368
        %1577 = vmatpush1.bf16.msra.mxu0 %v1367
        %1578 = vmatprep.subr.bf16.mxu0 %v1370
        %1579 = vmatpush1.bf16.msra.mxu0 %v1369
        %1580 = vmatprep.subr.bf16.mxu0 %v1372
        %1581 = vmatpush1.bf16.msra.mxu0 %v1371
        %1582 = vmatprep.subr.bf16.mxu0 %v1374
        %1583 = vmatpush1.bf16.msra.mxu0 %v1373
        %1584 = vmatprep.subr.bf16.mxu0 %v1376
        %1585 = vmatpush1.bf16.msra.mxu0 %v1375
        %1586 = vmatprep.subr.bf16.mxu0 %v1378
        %1587 = vmatpush1.bf16.msra.mxu0 %v1377
        %1588 = vmatprep.subr.bf16.mxu0 %v1380
        %1589 = vmatpush1.bf16.msra.mxu0 %v1379
        %1590 = vmatprep.subr.bf16.mxu0 %v1382
        %1591 = vmatpush1.bf16.msra.mxu0 %v1381
        %1592 = vmatprep.mubr.bf16.mxu0 %v1022
        %1593 = vmatmul.mubr.bf16.gmra.mrb[0].mxu0 %v1021
        %v1594 = vpop.f32.mrb[0].mxu0
        %v1595 = vadd.f32 %v1482, %v1594
        %v1596 = vpop.f32.mrb[0].mxu0
        %v1597 = vadd.f32 %v1484, %v1596
        %v1598 = vpop.f32.mrb[0].mxu0
        %v1599 = vadd.f32 %v1486, %v1598
        %v1600 = vpop.f32.mrb[0].mxu0
        %v1601 = vadd.f32 %v1488, %v1600
        %1602 = vmatprep.mubr.bf16.mxu0 %v1026
        %1603 = vmatmul.mubr.bf16.gmra.mrb[0].mxu0 %v1025
        %v1604 = vpop.f32.mrb[0].mxu0
        %v1605 = vadd.f32 %v1492, %v1604
        %v1606 = vpop.f32.mrb[0].mxu0
        %v1607 = vadd.f32 %v1494, %v1606
        %v1608 = vpop.f32.mrb[0].mxu0
        %v1609 = vadd.f32 %v1496, %v1608
        %v1610 = vpop.f32.mrb[0].mxu0
        %v1611 = vadd.f32 %v1498, %v1610
        %1612 = vmatprep.mubr.bf16.mxu0 %v1030
        %1613 = vmatmul.mubr.bf16.gmra.mrb[0].mxu0 %v1029
        %v1614 = vpop.f32.mrb[0].mxu0
        %v1615 = vadd.f32 %v1502, %v1614
        %v1616 = vpop.f32.mrb[0].mxu0
        %v1617 = vadd.f32 %v1504, %v1616
        %v1618 = vpop.f32.mrb[0].mxu0
        %v1619 = vadd.f32 %v1506, %v1618
        %v1620 = vpop.f32.mrb[0].mxu0
        %v1621 = vadd.f32 %v1508, %v1620
        %1622 = vmatprep.mubr.bf16.mxu0 %v1034
        %1623 = vmatmul.mubr.bf16.gmra.mrb[0].mxu0 %v1033
        %v1624 = vpop.f32.mrb[0].mxu0
        %v1625 = vadd.f32 %v1512, %v1624
        %v1626 = vpop.f32.mrb[0].mxu0
        %v1627 = vadd.f32 %v1514, %v1626
        %v1628 = vpop.f32.mrb[0].mxu0
        %v1629 = vadd.f32 %v1516, %v1628
        %v1630 = vpop.f32.mrb[0].mxu0
        %v1631 = vadd.f32 %v1518, %v1630
        %1632 = vmatprep.mubr.bf16.mxu0 %v1038
        %1633 = vmatmul.mubr.bf16.gmra.mrb[0].mxu0 %v1037
        %v1634 = vpop.f32.mrb[0].mxu0
        %v1635 = vadd.f32 %v1522, %v1634
        %v1636 = vpop.f32.mrb[0].mxu0
        %v1637 = vadd.f32 %v1524, %v1636
        %v1638 = vpop.f32.mrb[0].mxu0
        %v1639 = vadd.f32 %v1526, %v1638
        %v1640 = vpop.f32.mrb[0].mxu0
        %v1641 = vadd.f32 %v1528, %v1640
        %1642 = vmatprep.mubr.bf16.mxu0 %v1042
        %1643 = vmatmul.mubr.bf16.gmra.mrb[0].mxu0 %v1041
        %v1644 = vpop.f32.mrb[0].mxu0
        %v1645 = vadd.f32 %v1532, %v1644
        %v1646 = vpop.f32.mrb[0].mxu0
        %v1647 = vadd.f32 %v1534, %v1646
        %v1648 = vpop.f32.mrb[0].mxu0
        %v1649 = vadd.f32 %v1536, %v1648
        %v1650 = vpop.f32.mrb[0].mxu0
        %v1651 = vadd.f32 %v1538, %v1650
        %1652 = vmatprep.mubr.bf16.mxu0 %v1046
        %1653 = vmatmul.mubr.bf16.gmra.mrb[0].mxu0 %v1045
        %v1654 = vpop.f32.mrb[0].mxu0
        %v1655 = vadd.f32 %v1542, %v1654
        %v1656 = vpop.f32.mrb[0].mxu0
        %v1657 = vadd.f32 %v1544, %v1656
        %v1658 = vpop.f32.mrb[0].mxu0
        %v1659 = vadd.f32 %v1546, %v1658
        %v1660 = vpop.f32.mrb[0].mxu0
        %v1661 = vadd.f32 %v1548, %v1660
        %1662 = vmatprep.mubr.bf16.mxu0 %v1050
        %1663 = vmatmul.mubr.bf16.gmra.mrb[0].mxu0 %v1049
        %v1664 = vpop.f32.mrb[0].mxu0
        %v1665 = vadd.f32 %v1552, %v1664
        %v1666 = vpop.f32.mrb[0].mxu0
        %v1667 = vadd.f32 %v1554, %v1666
        %v1668 = vpop.f32.mrb[0].mxu0
        %v1669 = vadd.f32 %v1556, %v1668
        %v1670 = vpop.f32.mrb[0].mxu0
        %v1671 = vadd.f32 %v1558, %v1670
        %1672 = vdwg.mxu0
        %1673 = vst [vmem:[%s272] sm:$0xff] %v1595
        %1674 = vst [vmem:[%s272 + $0x8] sm:$0xff] %v1597
        %1675 = vst [vmem:[%s272 + $0x10] sm:$0xff] %v1599
        %1676 = vst [vmem:[%s272 + $0x18] sm:$0xff] %v1601
        %1677 = vst [vmem:[%s272 + $0x20] sm:$0xff] %v1605
        %1678 = vst [vmem:[%s272 + $0x28] sm:$0xff] %v1607
        %1679 = vst [vmem:[%s272 + $0x30] sm:$0xff] %v1609
        %1680 = vst [vmem:[%s272 + $0x38] sm:$0xff] %v1611
        %1681 = vst [vmem:[%s272 + $0x40] sm:$0xff] %v1615
        %1682 = vst [vmem:[%s272 + $0x48] sm:$0xff] %v1617
        %1683 = vst [vmem:[%s272 + $0x50] sm:$0xff] %v1619
        %1684 = vst [vmem:[%s272 + $0x58] sm:$0xff] %v1621
        %1685 = vst [vmem:[%s272 + $0x60] sm:$0xff] %v1625
        %1686 = vst [vmem:[%s272 + $0x68] sm:$0xff] %v1627
        %1687 = vst [vmem:[%s272 + $0x70] sm:$0xff] %v1629
        %1688 = vst [vmem:[%s272 + $0x78] sm:$0xff] %v1631
        %1689 = vst [vmem:[%s272 + $0x80] sm:$0xff] %v1635
        %1690 = vst [vmem:[%s272 + $0x88] sm:$0xff] %v1637
        %1691 = vst [vmem:[%s272 + $0x90] sm:$0xff] %v1639
        %1692 = vst [vmem:[%s272 + $0x98] sm:$0xff] %v1641
        %1693 = vst [vmem:[%s272 + $0xa0] sm:$0xff] %v1645
        %1694 = vst [vmem:[%s272 + $0xa8] sm:$0xff] %v1647
        %1695 = vst [vmem:[%s272 + $0xb0] sm:$0xff] %v1649
        %1696 = vst [vmem:[%s272 + $0xb8] sm:$0xff] %v1651
        %1697 = vst [vmem:[%s272 + $0xc0] sm:$0xff] %v1655
        %1698 = vst [vmem:[%s272 + $0xc8] sm:$0xff] %v1657
        %1699 = vst [vmem:[%s272 + $0xd0] sm:$0xff] %v1659
        %1700 = vst [vmem:[%s272 + $0xd8] sm:$0xff] %v1661
        %1701 = vst [vmem:[%s272 + $0xe0] sm:$0xff] %v1665
        %1702 = vst [vmem:[%s272 + $0xe8] sm:$0xff] %v1667
        %1703 = vst [vmem:[%s272 + $0xf0] sm:$0xff] %v1669
        %1704 = vst [vmem:[%s272 + $0xf8] sm:$0xff] %v1671
        %s1705 = sand.u32 %s141, 1
        %s1706 = scalar_lea.sflag [#allocation4], %s1705
        %s1707 = sand.u32 %s141, 1
        %s1708 = smul.addr %s1707, 256
        %s1709 = scalar_lea.vmem [#allocation8], %s1708
        // Predicated region
        $region53: #{tpu_custom_call.1} parent=39 // pred_check
          %p1710 = pneg %p151
        $region54: #{tpu_custom_call.1} parent=39 // pred_check_branch
          %1712 = sbr.rel (%p1710) target = $region56
        $region55: #{tpu_custom_call.1} parent=39 // pred_region
          %s1713 = smul.u32 16, %s23
          %s1715 = ssub.s32 4096, 4096
          %1716 = vsyncadd %s1706, %s1715
          %s1717 = smul.addr %s1713, 2
          %s1718 = smul.addr %s1717, 128
          %s1719 = scalar_lea.hbm %s5, %s1718
          %s1720 = sshll.u32 %s1709, 4
          %s1721 = int_to_ptr.vmem [resolvable:$true] %s1720
          %1726 = dma.vmem_to_hbm [thread:$0]  %s1721, 4096, %s1719, %s1706, 256, 256, 16
        $region56: #{tpu_custom_call.1} parent=39 // pred_fallthru
          _
      $region40: #{tpu_custom_call.1} parent=5 // pred_fallthru
        _
      %p1727 = scmp.le.s32.totalorder 2, %s18
      // Predicated region
      $region57: #{tpu_custom_call.1} parent=5 // pred_check
        %p1728 = pneg %p1727
      $region58: #{tpu_custom_call.1} parent=5 // pred_check_branch
        %1730 = sbr.rel (%p1728) target = $region60
      $region59: #{tpu_custom_call.1} parent=5 // pred_region
        %s1731 = ssub.s32 %s18, 2
        // Predicated region
        $region61: #{tpu_custom_call.1} parent=59 // pred_check
          %p1732 = pneg %p157
        $region62: #{tpu_custom_call.1} parent=59 // pred_check_branch
          %1734 = sbr.rel (%p1732) target = $region64
        $region63: #{tpu_custom_call.1} parent=59 // pred_region
          %s1735 = sand.u32 %s142, 1
          %s1736 = scalar_lea.sflag [#allocation4], %s1735
          %s1737 = sand.u32 %s142, 1
          %s1738 = smul.addr %s1737, 256
          %s1739 = scalar_lea.vmem [#allocation8], %s1738
          %1740 = dma.done %s1736, 4096
        $region64: #{tpu_custom_call.1} parent=59 // pred_fallthru
          _
      $region60: #{tpu_custom_call.1} parent=5 // pred_fallthru
        _
    $region6: #{tpu_custom_call.1} parent=1 // loop_footer
      %s22 = sadd.s32 1, %s18
    $region7: #{tpu_custom_call.1} parent=1 // loop_footer_branch
      %17 = sbr.rel target = $region3
    $region8: #{tpu_custom_call.1} parent=1 // loop_exit
      _
    %1741 = vsyncpa [#allocation3], 1
    %s1742 = scalar_lea.sflag [#allocation3], 1
    %1743 = vsyncpa %s1742, 1
    %1744 = vsyncpa [#allocation6], 1
    %1745 = vsyncpa [#allocation4], 1
    %s1746 = scalar_lea.sflag [#allocation4], 1
    %1747 = vsyncpa %s1746, 1

</llo_original>
